<compile_context>
chip_gen: v5e
topology: v5e:2x2
jax: 0.10.0
libtpu: 0.0.40
codegen_flags: <defaults>
</compile_context>

<pallas_src>
import functools

import jax
import jax.numpy as jnp
from jax.experimental import pallas as pl
from jax.experimental.pallas import tpu as pltpu

INPUT_DIM = 2
HIDDEN = 15
ENCODER_DIM = 20
NEG_SLOPE = 0.01  # nn.LeakyReLU() default negative_slope


def _deepset_kernel(x_ref, w1_ref, b1_ref, w2_ref, b2_ref, o_ref, *, channels_last):
    # x_ref : (D_in, NT)     one batch element, NT set elements on the lane axis
    # w1_ref: (H_pad, D_in)  fc1 weight, PyTorch (out, in) layout, zero-padded
    # b1_ref: (H_pad, 1)
    # channels_last:  w2_ref = w2.T padded -> (H_pad, enc), b2_ref: (1, enc),
    #                 o_ref : (NT, enc)
    # feature-major:  w2_ref: (enc, H_pad), b2_ref: (enc, 1), o_ref: (enc, NT)
    x = x_ref[...]
    w1 = w1_ref[...]

    # fc1 on the VPU: K = input_dim (= 2) -> broadcast FMAs, no MXU fill/drain.
    h = jnp.broadcast_to(b1_ref[...], (w1.shape[0], x.shape[1]))
    for k in range(x.shape[0]):  # static tiny loop over input_dim
        h = h + w1[:, k:k + 1] * x[k:k + 1, :]

    # LeakyReLU: max(h, slope*h) == where(h > 0, h, slope*h) for slope < 1.
    h = jnp.maximum(h, NEG_SLOPE * h)

    if channels_last:
        # XLU transpose of the 8-aligned (H_pad, NT) tile, then MXU fc2 that
        # directly yields the (NT, enc) channels-last tile -> output is stored
        # in the module's (B, N, enc) layout, no wrapper transpose needed.
        h_t = jnp.transpose(h)                                        # (NT, H_pad)
        y = jnp.dot(h_t, w2_ref[...], preferred_element_type=jnp.float32)
        o_ref[...] = (y + b2_ref[...]).astype(o_ref.dtype)            # (NT, enc)
    else:
        # Fully lane-dense feature-major result (enc, NT).
        y = jnp.dot(w2_ref[...], h, preferred_element_type=jnp.float32)
        o_ref[...] = (y + b2_ref[...]).astype(o_ref.dtype)            # (enc, NT)


def _pick_n_tile(n, candidates, max_tile=None):
    """Largest candidate dividing n (n is a multiple of 128, so 128 always works)."""
    if max_tile is not None:
        for t in candidates:
            if t <= max_tile and n % t == 0:
                return t
    for t in candidates:
        if n % t == 0:
            return t
    return 128  # unreachable: n is a multiple of 128 and 128 is a candidate


@functools.partial(jax.jit, static_argnames=("channels_last_output", "out_dtype"))
def deepset_encoder_forward(x, w1, b1, w2, b2, *, channels_last_output=True,
                            out_dtype=jnp.float32):
    """DeepSetEncoder forward.

    x : (B, input_dim, N) float32
    w1: (15, input_dim), b1: (15,)          -- PyTorch nn.Linear (out, in)
    w2: (encoder_dim, 15), b2: (encoder_dim,)
    Returns (B, N, encoder_dim) (the PyTorch module contract); pass
    channels_last_output=False for the lane-dense (B, encoder_dim, N) layout,
    and out_dtype=jnp.bfloat16 to halve output HBM traffic.
    """
    B, D_in, N = x.shape
    H, enc = w1.shape[0], w2.shape[0]
    assert w1.shape == (H, D_in) and w2.shape == (enc, H)
    assert b1.shape == (H,) and b2.shape == (enc,)

    # Pad hidden dim to a multiple of 8 sublanes (15 -> 16) with zeros; padded
    # rows stay exactly 0 through LeakyReLU and hit all-zero fc2 columns.
    hp = ((H + 7) // 8) * 8
    w1p = jnp.zeros((hp, D_in), jnp.float32).at[:H].set(w1)
    b1p = jnp.zeros((hp, 1), jnp.float32).at[:H, 0].set(b1)

    # Pad N to a multiple of 128 so every block is lane-aligned and we never
    # fall back to a whole-N block (VMEM hazard for huge N, esp. v7x 64 MiB).
    n_pad = ((N + 127) // 128) * 128
    xp = x if n_pad == N else jnp.pad(x, ((0, 0), (0, 0), (0, n_pad - N)))

    if channels_last_output:
        # (NT, enc) output tile is lane-padded 20 -> 128 in VMEM; cap the tile.
        candidates = (2048, 1024, 512, 256, 128)
    else:
        # Lane-dense output: go big to amortize the ~0.35 us per-step overhead.
        candidates = (16384, 8192, 4096, 2048, 1024, 512, 256, 128)
    # Keep >= 2 "parallel" tiles when B == 1 so both v7x TensorCores get work.
    max_tile = n_pad // 2 if (B == 1 and n_pad >= 256) else None
    nt = _pick_n_tile(n_pad, candidates, max_tile)
    grid = (B, n_pad // nt)

    if channels_last_output:
        w2p = jnp.zeros((hp, enc), jnp.float32).at[:H, :].set(w2.T)
        b2p = b2.reshape(1, enc).astype(jnp.float32)
        out_shape = jax.ShapeDtypeStruct((B, n_pad, enc), out_dtype)
        out_spec = pl.BlockSpec((pl.Squeezed(), nt, enc), lambda b, j: (b, j, 0))
        w2_spec = pl.BlockSpec((hp, enc), lambda b, j: (0, 0))
        b2_spec = pl.BlockSpec((1, enc), lambda b, j: (0, 0))
    else:
        w2p = jnp.zeros((enc, hp), jnp.float32).at[:, :H].set(w2)
        b2p = b2.reshape(enc, 1).astype(jnp.float32)
        out_shape = jax.ShapeDtypeStruct((B, enc, n_pad), out_dtype)
        out_spec = pl.BlockSpec((pl.Squeezed(), enc, nt), lambda b, j: (b, 0, j))
        w2_spec = pl.BlockSpec((enc, hp), lambda b, j: (0, 0))
        b2_spec = pl.BlockSpec((enc, 1), lambda b, j: (0, 0))

    out_itemsize = jnp.dtype(out_dtype).itemsize
    flops = 2 * B * n_pad * (D_in * H + H * enc)
    bytes_accessed = (4 * B * n_pad * D_in
                      + out_itemsize * B * n_pad * enc
                      + 4 * (hp * (D_in + 1) + enc * (hp + 1)))

    kernel = functools.partial(_deepset_kernel, channels_last=channels_last_output)

    out = pl.pallas_call(
        kernel,
        out_shape=out_shape,
        grid=grid,
        in_specs=[
            # (B, D_in, N_pad): one batch row, NT lanes per tile (dense loads).
            pl.BlockSpec((pl.Squeezed(), D_in, nt), lambda b, j: (b, 0, j)),
            # Weights / biases: full-array blocks with constant index_map so
            # they stay VMEM-resident across the grid.
            pl.BlockSpec((hp, D_in), lambda b, j: (0, 0)),
            pl.BlockSpec((hp, 1), lambda b, j: (0, 0)),
            w2_spec,
            b2_spec,
        ],
        out_specs=out_spec,
        compiler_params=pltpu.CompilerParams(
            dimension_semantics=("parallel", "parallel"),
            # Small per-tile footprint; 32 MiB is safe on v5e/v6e/v7x.
            vmem_limit_bytes=32 * 1024 * 1024,
        ),
        cost_estimate=pl.CostEstimate(
            flops=flops, transcendentals=0, bytes_accessed=bytes_accessed),
    )(xp, w1p, b1p, w2p, b2p)

    if n_pad != N:
        out = out[:, :N, :] if channels_last_output else out[:, :, :N]
    return out


def _reference_forward(x, w1, b1, w2, b2):
    xt = jnp.transpose(x, (0, 2, 1))          # (B, N, D_in)
    h = xt @ w1.T + b1
    h = jnp.where(h > 0, h, NEG_SLOPE * h)
    return h @ w2.T + b2


if __name__ == "__main__":
    key = jax.random.PRNGKey(0)
    kx, k1, k2, k3, k4 = jax.random.split(key, 5)

    # (batch, input_dim, set size)
    B, D_in, N = 2, INPUT_DIM, 1024
    x = jax.random.normal(kx, (B, D_in, N), jnp.float32)

    # PyTorch nn.Linear layouts: weight (out, in), bias (out,)
    w1 = jax.random.normal(k1, (HIDDEN, D_in), jnp.float32) * 0.1
    b1 = jax.random.normal(k2, (HIDDEN,), jnp.float32) * 0.1
    w2 = jax.random.normal(k3, (ENCODER_DIM, HIDDEN), jnp.float32) * 0.1
    b2 = jax.random.normal(k4, (ENCODER_DIM,), jnp.float32) * 0.1

    ref = _reference_forward(x, w1, b1, w2, b2)

    # 1) Default: fused channels-last output (matches the PyTorch contract).
    out = jax.block_until_ready(deepset_encoder_forward(x, w1, b1, w2, b2))
    assert out.shape == (B, N, ENCODER_DIM)
    assert jnp.allclose(out, ref, atol=1e-4, rtol=1e-4), "channels-last mismatch"

    # 2) Lane-dense feature-major output for feature-major consumers.
    out_fm = jax.block_until_ready(
        deepset_encoder_forward(x, w1, b1, w2, b2, channels_last_output=False))
    assert out_fm.shape == (B, ENCODER_DIM, N)
    assert jnp.allclose(jnp.transpose(out_fm, (0, 2, 1)), ref,
                        atol=1e-4, rtol=1e-4), "feature-major mismatch"

    # 3) bf16 output (halves output HBM bytes); loosened tolerance.
    out_bf16 = jax.block_until_ready(
        deepset_encoder_forward(x, w1, b1, w2, b2, out_dtype=jnp.bfloat16))
    assert out_bf16.dtype == jnp.bfloat16
    assert jnp.allclose(out_bf16.astype(jnp.float32), ref,
                        atol=5e-2, rtol=5e-2), "bf16 mismatch"

    # 4) Ragged N (not a multiple of 128) and B == 1 (megacore-aware tiling).
    x2 = jax.random.normal(kx, (1, D_in, 200), jnp.float32)
    out2 = jax.block_until_ready(deepset_encoder_forward(x2, w1, b1, w2, b2))
    ref2 = _reference_forward(x2, w1, b1, w2, b2)
    assert out2.shape == (1, 200, ENCODER_DIM)
    assert jnp.allclose(out2, ref2, atol=1e-4, rtol=1e-4), "ragged-N mismatch"

    print("KERNEL_OK")
</pallas_src>

<mosaic_0001>
module attributes {stable_mosaic.version = 11 : i64} {
  func.func @_deepset_kernel(%arg0: i32, %arg1: i32, %arg2: memref<1x2x1024xf32, #tpu.memory_space<vmem>>, %arg3: memref<16x2xf32, #tpu.memory_space<vmem>>, %arg4: memref<16x1xf32, #tpu.memory_space<vmem>>, %arg5: memref<16x20xf32, #tpu.memory_space<vmem>>, %arg6: memref<1x20xf32, #tpu.memory_space<vmem>>, %arg7: memref<1x1024x20xf32, #tpu.memory_space<vmem>>) attributes {dimension_semantics = [#tpu.dimension_semantics<parallel>, #tpu.dimension_semantics<parallel>], iteration_bounds = array<i64: 2, 1>, scalar_prefetch = 0 : i64, scratch_operands = 0 : i64, tpu.core_type = #tpu.core_type<tc>, window_params = [{transform_indices = @transform_0, window_bounds = array<i64: 1, 2, 1024>}, {pipeline_mode = #tpu.pipeline_mode<synchronous>, transform_indices = @transform_1, window_bounds = array<i64: 16, 2>}, {pipeline_mode = #tpu.pipeline_mode<synchronous>, transform_indices = @transform_2, window_bounds = array<i64: 16, 1>}, {pipeline_mode = #tpu.pipeline_mode<synchronous>, transform_indices = @transform_3, window_bounds = array<i64: 16, 20>}, {pipeline_mode = #tpu.pipeline_mode<synchronous>, transform_indices = @transform_4, window_bounds = array<i64: 1, 20>}, {transform_indices = @transform_5, window_bounds = array<i64: 1, 1024, 20>}]} {
    %c0 = arith.constant 0 : index
    %c0_0 = arith.constant 0 : index
    %c0_1 = arith.constant 0 : index
    %0 = vector.load %arg2[%c0, %c0_0, %c0_1] : memref<1x2x1024xf32, #tpu.memory_space<vmem>>, vector<1x2x1024xf32>
    %1 = vector.shape_cast %0 : vector<1x2x1024xf32> to vector<2x1024xf32>
    %c0_2 = arith.constant 0 : index
    %c0_3 = arith.constant 0 : index
    %2 = vector.load %arg3[%c0_2, %c0_3] : memref<16x2xf32, #tpu.memory_space<vmem>>, vector<16x2xf32>
    %c0_4 = arith.constant 0 : index
    %c0_5 = arith.constant 0 : index
    %3 = vector.load %arg4[%c0_4, %c0_5] : memref<16x1xf32, #tpu.memory_space<vmem>>, vector<16x1xf32>
    %4 = vector.shape_cast %3 : vector<16x1xf32> to vector<16x1xf32>
    %5 = vector.broadcast %4 : vector<16x1xf32> to vector<16x1024xf32>
    %6 = vector.extract_strided_slice %2 {offsets = [0, 0], sizes = [16, 1], strides = [1, 1]} : vector<16x2xf32> to vector<16x1xf32>
    %7 = vector.extract_strided_slice %1 {offsets = [0, 0], sizes = [1, 1024], strides = [1, 1]} : vector<2x1024xf32> to vector<1x1024xf32>
    %8 = vector.broadcast %6 : vector<16x1xf32> to vector<16x1024xf32>
    %9 = vector.broadcast %7 : vector<1x1024xf32> to vector<16x1024xf32>
    %10 = arith.mulf %8, %9 : vector<16x1024xf32>
    %11 = arith.addf %5, %10 : vector<16x1024xf32>
    %12 = vector.extract_strided_slice %2 {offsets = [0, 1], sizes = [16, 1], strides = [1, 1]} : vector<16x2xf32> to vector<16x1xf32>
    %13 = vector.extract_strided_slice %1 {offsets = [1, 0], sizes = [1, 1024], strides = [1, 1]} : vector<2x1024xf32> to vector<1x1024xf32>
    %14 = vector.broadcast %12 : vector<16x1xf32> to vector<16x1024xf32>
    %15 = vector.broadcast %13 : vector<1x1024xf32> to vector<16x1024xf32>
    %16 = arith.mulf %14, %15 : vector<16x1024xf32>
    %17 = arith.addf %11, %16 : vector<16x1024xf32>
    %cst = arith.constant 0.00999999977 : f32
    %18 = vector.broadcast %cst : f32 to vector<16x1024xf32>
    %19 = arith.mulf %18, %17 : vector<16x1024xf32>
    %20 = arith.maximumf %17, %19 : vector<16x1024xf32>
    %21 = tpu.transpose %20, [1, 0] : vector<16x1024xf32> -> vector<1024x16xf32>
    %c0_6 = arith.constant 0 : index
    %c0_7 = arith.constant 0 : index
    %22 = vector.load %arg5[%c0_6, %c0_7] : memref<16x20xf32, #tpu.memory_space<vmem>>, vector<16x20xf32>
    %cst_8 = arith.constant dense<0.000000e+00> : vector<1024x20xf32>
    %23 = tpu.matmul %21, %22, %cst_8 {dimension_numbers = #tpu.dot_dimension_numbers<[1], [0], [0], [1], [0, 0, 1, 1], [], []>} : vector<1024x16xf32>, vector<16x20xf32>, vector<1024x20xf32> -> vector<1024x20xf32>
    %c0_9 = arith.constant 0 : index
    %c0_10 = arith.constant 0 : index
    %24 = vector.load %arg6[%c0_9, %c0_10] : memref<1x20xf32, #tpu.memory_space<vmem>>, vector<1x20xf32>
    %25 = vector.broadcast %24 : vector<1x20xf32> to vector<1024x20xf32>
    %26 = arith.addf %23, %25 : vector<1024x20xf32>
    %c0_11 = arith.constant 0 : index
    %c0_12 = arith.constant 0 : index
    %c0_13 = arith.constant 0 : index
    %27 = vector.load %arg7[%c0_11, %c0_12, %c0_13] : memref<1x1024x20xf32, #tpu.memory_space<vmem>>, vector<1x1024x20xf32>
    %28 = vector.shape_cast %27 : vector<1x1024x20xf32> to vector<1024x20xf32>
    %29 = vector.shape_cast %26 : vector<1024x20xf32> to vector<1x1024x20xf32>
    tpu.vector_store %arg7[%c0_11, %c0_12, %c0_13], %29 {strides = array<i32>} : memref<1x1024x20xf32, #tpu.memory_space<vmem>>, vector<1x1024x20xf32>,
    return
  }
  func.func @transform_0(%arg0: i32, %arg1: i32) -> (i32, i32, i32) {
    %c0_i32 = arith.constant 0 : i32
    %c0_i32_0 = arith.constant 0 : i32
    return %arg0, %c0_i32, %arg1 : i32, i32, i32
  }
  func.func @transform_1(%arg0: i32, %arg1: i32) -> (i32, i32) {
    %c0_i32 = arith.constant 0 : i32
    %c0_i32_0 = arith.constant 0 : i32
    %c0_i32_1 = arith.constant 0 : i32
    return %c0_i32, %c0_i32_0 : i32, i32
  }
  func.func @transform_2(%arg0: i32, %arg1: i32) -> (i32, i32) {
    %c0_i32 = arith.constant 0 : i32
    %c0_i32_0 = arith.constant 0 : i32
    %c0_i32_1 = arith.constant 0 : i32
    return %c0_i32, %c0_i32_0 : i32, i32
  }
  func.func @transform_3(%arg0: i32, %arg1: i32) -> (i32, i32) {
    %c0_i32 = arith.constant 0 : i32
    %c0_i32_0 = arith.constant 0 : i32
    %c0_i32_1 = arith.constant 0 : i32
    return %c0_i32, %c0_i32_0 : i32, i32
  }
  func.func @transform_4(%arg0: i32, %arg1: i32) -> (i32, i32) {
    %c0_i32 = arith.constant 0 : i32
    %c0_i32_0 = arith.constant 0 : i32
    %c0_i32_1 = arith.constant 0 : i32
    return %c0_i32, %c0_i32_0 : i32, i32
  }
  func.func @transform_5(%arg0: i32, %arg1: i32) -> (i32, i32, i32) {
    %c0_i32 = arith.constant 0 : i32
    %c0_i32_0 = arith.constant 0 : i32
    return %arg0, %arg1, %c0_i32 : i32, i32, i32
  }
}

</mosaic_0001>

<llo_original>
// kernel: deepset_encoder_forward.1
$region0: #{deepset_encoder_forward.1}
  #allocation0 [shape = 'u32[]', space=smem, size = 0x4, offset = 0x4, fixed_abs, tag = 'smem constant byte address 0x4 - core index']
  #allocation1 [shape = 'u32[72,128]{1,0:T(1,128)}', space=vmem, size = 0x9000, scoped, tag = 'internal scratch']
  %s0 = inlined_call_operand.vmem [shape: f32[2,2,1024], index: 0, kind: input, shape index: {}]
  %s1 = inlined_call_operand.vmem [shape: f32[16,2], index: 1, kind: input, shape index: {}]
  %s2 = inlined_call_operand.vmem [shape: f32[16,1], index: 2, kind: input, shape index: {}]
  %s3 = inlined_call_operand.vmem [shape: f32[16,20], index: 3, kind: input, shape index: {}]
  %s4 = inlined_call_operand.vmem [shape: f32[1,20], index: 4, kind: input, shape index: {}]
  %s5 = inlined_call_operand.vmem [shape: f32[2,1024,20], index: 5, kind: output, shape index: {}]
  %s6 = sld [smem:[#allocation0]]
  $region53: #{deepset_encoder_forward.1} parent=0
    _
  %s8 = ssub.s32 1, %s6
  %s9 = scalar_select 0, %s8, %s6
  loop: start=0, step=1, limit=4
  $region2: #{deepset_encoder_forward.1} parent=0 // loop_pre_header
    _
  $region3: #{deepset_encoder_forward.1} parent=0 // loop_header
    %s11 = sphi 0, %s15
    %p12 = scmp.ge.s32.totalorder %s11, 4
    %s18 = sphi 0, %s30
    %s19 = sphi 0, %s26
    %s20 = sphi 0, %s18
    %s21 = sphi 0, %s19
    %s22 = sphi 0, %s20
    %s23 = sphi 0, %s21
    %s35 = sphi 0, %s37
    %s38 = sphi 0, %s35
    %s39 = sphi 0, %s38
    %s55 = sphi 0, %s39
    %s59 = sphi 0, %s59
    %s61 = sphi 0, %s59
    %s62 = sphi 0, %s61
    %s76 = sphi 0, %s62
    %s80 = sphi 0, %s80
    %s82 = sphi 0, %s80
    %s83 = sphi 0, %s82
    %s97 = sphi 0, %s83
    %s101 = sphi 0, %s101
    %s103 = sphi 0, %s101
    %s104 = sphi 0, %s103
    %s118 = sphi 0, %s104
    %s122 = sphi 0, %s122
    %s124 = sphi 0, %s122
    %s125 = sphi 0, %s124
    %s139 = sphi 0, %s125
    %s147 = sphi 0, %s149
    %s150 = sphi 0, %s147
    %s151 = sphi 0, %s150
    %s167 = sphi 0, %s151
  $region4: #{deepset_encoder_forward.1} parent=0 // loop_header_branch
    %14 = sbr.rel (%p12) target = $region8
  $region5: #{deepset_encoder_forward.1} parent=0 // loop_body
    %s16 = ssub.s32 %s11, 1
    %s17 = ssub.s32 %s11, 2
    %s24 = sadd.s32 1, %s19
    %p25 = scmp.ge.s32.totalorder %s24, 1
    %s26 = scalar_select %p25, 0, %s24
    %s27 = sadd.s32 1, %s18
    %s28 = scalar_select %p25, %s27, %s18
    %p29 = scmp.ge.s32.totalorder %s28, 2
    %s30 = scalar_select %p29, 0, %s28
    %s31 = ssub.s32 %s18, %s30
    %s32 = ssub.s32 %s19, %s26
    %s33 = sor.u32 %s31, %s32
    %p34 = scmp.eq.s32.totalorder %s33, 0
    %s36 = sadd.s32 %s35, 1
    %s37 = scalar_select %p34, %s35, %s36
    %p40 = pneg %p34
    %p41 = scmp.eq.s32.totalorder %s11, 1
    %p42 = por %p40, %p41
    %p43 = scmp.ne.s32.totalorder %s35, %s38
    %p44 = scmp.eq.s32.totalorder %s11, 0
    %p45 = por %p43, %p44
    %p46 = scmp.ne.s32.totalorder %s35, %s38
    %p47 = scmp.eq.s32.totalorder %s16, 1
    %p48 = por %p46, %p47
    %p49 = scmp.ne.s32.totalorder %s38, %s39
    %p50 = scmp.eq.s32.totalorder %s16, 0
    %p51 = por %p49, %p50
    %p52 = scmp.ne.s32.totalorder %s38, %s39
    %p53 = scmp.eq.s32.totalorder %s17, 1
    %p54 = por %p52, %p53
    %p56 = scmp.ne.s32.totalorder %s39, %s55
    %p57 = scmp.eq.s32.totalorder %s17, 0
    %p58 = por %p56, %p57
    %s60 = sadd.s32 %s59, 1
    %p63 = scmp.eq.s32.totalorder %s11, 1
    %p64 = scmp.ne.s32.totalorder %s59, %s61
    %p65 = scmp.eq.s32.totalorder %s11, 0
    %p66 = por %p64, %p65
    %p67 = scmp.ne.s32.totalorder %s59, %s61
    %p68 = scmp.eq.s32.totalorder %s16, 1
    %p69 = por %p67, %p68
    %p70 = scmp.ne.s32.totalorder %s61, %s62
    %p71 = scmp.eq.s32.totalorder %s16, 0
    %p72 = por %p70, %p71
    %p73 = scmp.ne.s32.totalorder %s61, %s62
    %p74 = scmp.eq.s32.totalorder %s17, 1
    %p75 = por %p73, %p74
    %p77 = scmp.ne.s32.totalorder %s62, %s76
    %p78 = scmp.eq.s32.totalorder %s17, 0
    %p79 = por %p77, %p78
    %s81 = sadd.s32 %s80, 1
    %p84 = scmp.eq.s32.totalorder %s11, 1
    %p85 = scmp.ne.s32.totalorder %s80, %s82
    %p86 = scmp.eq.s32.totalorder %s11, 0
    %p87 = por %p85, %p86
    %p88 = scmp.ne.s32.totalorder %s80, %s82
    %p89 = scmp.eq.s32.totalorder %s16, 1
    %p90 = por %p88, %p89
    %p91 = scmp.ne.s32.totalorder %s82, %s83
    %p92 = scmp.eq.s32.totalorder %s16, 0
    %p93 = por %p91, %p92
    %p94 = scmp.ne.s32.totalorder %s82, %s83
    %p95 = scmp.eq.s32.totalorder %s17, 1
    %p96 = por %p94, %p95
    %p98 = scmp.ne.s32.totalorder %s83, %s97
    %p99 = scmp.eq.s32.totalorder %s17, 0
    %p100 = por %p98, %p99
    %s102 = sadd.s32 %s101, 1
    %p105 = scmp.eq.s32.totalorder %s11, 1
    %p106 = scmp.ne.s32.totalorder %s101, %s103
    %p107 = scmp.eq.s32.totalorder %s11, 0
    %p108 = por %p106, %p107
    %p109 = scmp.ne.s32.totalorder %s101, %s103
    %p110 = scmp.eq.s32.totalorder %s16, 1
    %p111 = por %p109, %p110
    %p112 = scmp.ne.s32.totalorder %s103, %s104
    %p113 = scmp.eq.s32.totalorder %s16, 0
    %p114 = por %p112, %p113
    %p115 = scmp.ne.s32.totalorder %s103, %s104
    %p116 = scmp.eq.s32.totalorder %s17, 1
    %p117 = por %p115, %p116
    %p119 = scmp.ne.s32.totalorder %s104, %s118
    %p120 = scmp.eq.s32.totalorder %s17, 0
    %p121 = por %p119, %p120
    %s123 = sadd.s32 %s122, 1
    %p126 = scmp.eq.s32.totalorder %s11, 1
    %p127 = scmp.ne.s32.totalorder %s122, %s124
    %p128 = scmp.eq.s32.totalorder %s11, 0
    %p129 = por %p127, %p128
    %p130 = scmp.ne.s32.totalorder %s122, %s124
    %p131 = scmp.eq.s32.totalorder %s16, 1
    %p132 = por %p130, %p131
    %p133 = scmp.ne.s32.totalorder %s124, %s125
    %p134 = scmp.eq.s32.totalorder %s16, 0
    %p135 = por %p133, %p134
    %p136 = scmp.ne.s32.totalorder %s124, %s125
    %p137 = scmp.eq.s32.totalorder %s17, 1
    %p138 = por %p136, %p137
    %p140 = scmp.ne.s32.totalorder %s125, %s139
    %p141 = scmp.eq.s32.totalorder %s17, 0
    %p142 = por %p140, %p141
    %s143 = ssub.s32 %s18, %s30
    %s144 = ssub.s32 %s19, %s26
    %s145 = sor.u32 %s143, %s144
    %p146 = scmp.eq.s32.totalorder %s145, 0
    %s148 = sadd.s32 %s147, 1
    %s149 = scalar_select %p146, %s147, %s148
    %p152 = pneg %p146
    %p153 = scmp.eq.s32.totalorder %s11, 1
    %p154 = por %p152, %p153
    %p155 = scmp.ne.s32.totalorder %s147, %s150
    %p156 = scmp.eq.s32.totalorder %s11, 0
    %p157 = por %p155, %p156
    %p158 = scmp.ne.s32.totalorder %s147, %s150
    %p159 = scmp.eq.s32.totalorder %s16, 1
    %p160 = por %p158, %p159
    %p161 = scmp.ne.s32.totalorder %s150, %s151
    %p162 = scmp.eq.s32.totalorder %s16, 0
    %p163 = por %p161, %p162
    %p164 = scmp.ne.s32.totalorder %s150, %s151
    %p165 = scmp.eq.s32.totalorder %s17, 1
    %p166 = por %p164, %p165
    %p168 = scmp.ne.s32.totalorder %s151, %s167
    %p169 = scmp.eq.s32.totalorder %s17, 0
    %p170 = por %p168, %p169
    %p171 = scmp.le.s32.totalorder 1, %s11
    %p172 = scmp.lt.s32.totalorder %s11, 3
    %p173 = pnand %p171, %p172
    %p174 = pneg %p173
    // Predicated region
    $region9: #{deepset_encoder_forward.1} parent=5 // pred_check
      _
    $region10: #{deepset_encoder_forward.1} parent=5 // pred_check_branch
      %176 = sbr.rel (%p173) target = $region12
    $region11: #{deepset_encoder_forward.1} parent=5 // pred_region
      %s177 = ssub.s32 %s11, 1
      // Predicated region
      $region13: #{deepset_encoder_forward.1} parent=11 // pred_check
        %p178 = pneg %p72
      $region14: #{deepset_encoder_forward.1} parent=11 // pred_check_branch
        %180 = sbr.rel (%p178) target = $region16
      $region15: #{deepset_encoder_forward.1} parent=11 // pred_region
        _
      $region16: #{deepset_encoder_forward.1} parent=11 // pred_fallthru
        _
      // Predicated region
      $region17: #{deepset_encoder_forward.1} parent=11 // pred_check
        %p181 = pneg %p93
      $region18: #{deepset_encoder_forward.1} parent=11 // pred_check_branch
        %183 = sbr.rel (%p181) target = $region20
      $region19: #{deepset_encoder_forward.1} parent=11 // pred_region
        _
      $region20: #{deepset_encoder_forward.1} parent=11 // pred_fallthru
        _
      // Predicated region
      $region21: #{deepset_encoder_forward.1} parent=11 // pred_check
        %p184 = pneg %p114
      $region22: #{deepset_encoder_forward.1} parent=11 // pred_check_branch
        %186 = sbr.rel (%p184) target = $region24
      $region23: #{deepset_encoder_forward.1} parent=11 // pred_region
        _
      $region24: #{deepset_encoder_forward.1} parent=11 // pred_fallthru
        _
      // Predicated region
      $region25: #{deepset_encoder_forward.1} parent=11 // pred_check
        %p187 = pneg %p135
      $region26: #{deepset_encoder_forward.1} parent=11 // pred_check_branch
        %189 = sbr.rel (%p187) target = $region28
      $region27: #{deepset_encoder_forward.1} parent=11 // pred_region
        _
      $region28: #{deepset_encoder_forward.1} parent=11 // pred_fallthru
        _
    $region12: #{deepset_encoder_forward.1} parent=5 // pred_fallthru
      _
    %p190 = scmp.lt.s32.totalorder %s11, 2
    // Predicated region
    $region29: #{deepset_encoder_forward.1} parent=5 // pred_check
      %p191 = pneg %p190
    $region30: #{deepset_encoder_forward.1} parent=5 // pred_check_branch
      %193 = sbr.rel (%p191) target = $region32
    $region31: #{deepset_encoder_forward.1} parent=5 // pred_region
      // Predicated region
      $region33: #{deepset_encoder_forward.1} parent=31 // pred_check
        %p194 = pneg %p45
      $region34: #{deepset_encoder_forward.1} parent=31 // pred_check_branch
        %196 = sbr.rel (%p194) target = $region36
      $region35: #{deepset_encoder_forward.1} parent=31 // pred_region
        %s197 = smul.u32 8, %s19
        %p198 = scmp.lt.s32.totalorder %s18, 1
        %s199 = scalar_select %p198, %s18, 1
        %p200 = scmp.lt.s32.totalorder %s197, 7
        %s201 = scalar_select %p200, %s197, 7
        %s202 = smul.addr %s199, 8
        %s203 = sadd.s32 %s201, %s202
        %s204 = smul.addr %s203, 2
        %s205 = scalar_lea.vmem %s0, %s204
        %s206 = smul.u32 8, %s19
      $region36: #{deepset_encoder_forward.1} parent=31 // pred_fallthru
        _
    $region32: #{deepset_encoder_forward.1} parent=5 // pred_fallthru
      _
    %p207 = scmp.le.s32.totalorder 1, %s11
    %p208 = scmp.lt.s32.totalorder %s11, 3
    %p209 = pnand %p207, %p208
    %p210 = pneg %p209
    // Predicated region
    $region37: #{deepset_encoder_forward.1} parent=5 // pred_check
      _
    $region38: #{deepset_encoder_forward.1} parent=5 // pred_check_branch
      %212 = sbr.rel (%p209) target = $region40
    $region39: #{deepset_encoder_forward.1} parent=5 // pred_region
      %s213 = ssub.s32 %s11, 1
      %s214 = smul.u32 8, %s21
      %p215 = scmp.lt.s32.totalorder %s20, 1
      %s216 = scalar_select %p215, %s20, 1
      %p217 = scmp.lt.s32.totalorder %s214, 7
      %s218 = scalar_select %p217, %s214, 7
      %s219 = smul.addr %s216, 8
      %s220 = sadd.s32 %s218, %s219
      %s221 = smul.addr %s220, 2
      %s222 = scalar_lea.vmem %s0, %s221
      %p223 = pneg %p51
      %p224 = pneg %p48
      %p225 = pneg %p72
      %p226 = pneg %p69
      %p227 = pneg %p93
      %p228 = pneg %p90
      %p229 = pneg %p114
      %p230 = pneg %p111
      %p231 = pneg %p135
      %p232 = pneg %p132
      %p233 = pneg %p163
      %p234 = pneg %p160
      %s235 = smul.u32 128, %s21
      %p236 = scmp.lt.s32.totalorder %s20, 1
      %s237 = scalar_select %p236, %s20, 1
      %p238 = scmp.lt.s32.totalorder %s235, 127
      %s239 = scalar_select %p238, %s235, 127
      %s240 = smul.addr %s237, 128
      %s241 = sadd.s32 %s239, %s240
      %s242 = smul.addr %s241, 8
      %s243 = scalar_lea.vmem %s5, %s242
      %s244 = smul.u32 8, %s21
      %p245 = scmp.lt.s32.totalorder %s20, 1
      %s246 = scalar_select %p245, %s20, 1
      %p247 = scmp.lt.s32.totalorder %s244, 7
      %s248 = scalar_select %p247, %s244, 7
      %s249 = smul.addr %s246, 8
      %s250 = sadd.s32 %s248, %s249
      %s251 = smul.addr %s250, 2
      %s252 = scalar_lea.vmem %s0, %s251
      %s253 = smul.u32 8, %s21
      %s254 = smul.u32 128, %s21
      %p255 = scmp.lt.s32.totalorder %s20, 1
      %s256 = scalar_select %p255, %s20, 1
      %p257 = scmp.lt.s32.totalorder %s254, 127
      %s258 = scalar_select %p257, %s254, 127
      %s259 = smul.addr %s256, 128
      %s260 = sadd.s32 %s258, %s259
      %s261 = smul.addr %s260, 8
      %s262 = scalar_lea.vmem %s5, %s261
      %s263 = smul.u32 128, %s21
      %v264 = vld [vmem:[%s252] sm:$0xff]
      %v265 = vld [vmem:[%s252 + $0x8] sm:$0xff]
      %v266 = vld [vmem:[%s1] sm:$0xff]
      %v267 = vld [vmem:[%s1 + $0x8] sm:$0xff]
      %v268 = vld [vmem:[%s2] sm:$0xff]
      %v269 = vld [vmem:[%s2 + $0x8] sm:$0xff]
      %271 = vset.pattern.permute.xlu0 0
      %272 = vperm.xlu0 %271, %v268
      %v273 = vpop.permute.xlu0 %272
      %276 = vset.pattern.permute.xlu0 0
      %277 = vperm.xlu0 %276, %v269
      %v278 = vpop.permute.xlu0 %277
      %281 = vset.pattern.permute.xlu0 0
      %282 = vperm.xlu0 %281, %v266
      %v283 = vpop.permute.xlu0 %282
      %286 = vset.pattern.permute.xlu0 0
      %287 = vperm.xlu0 %286, %v267
      %v288 = vpop.permute.xlu0 %287
      %v292 = vperm.slane %v264, 0
      %v293 = vperm.slane %v264, 2
      %v294 = vperm.slane %v264, 4
      %v295 = vperm.slane %v264, 6
      %v296 = vperm.slane %v265, 0
      %v297 = vperm.slane %v265, 2
      %v298 = vperm.slane %v265, 4
      %v299 = vperm.slane %v265, 6
      %v308 = vperm.slane %v292, 0
      %v309 = vperm.slane %v293, 0
      %v310 = vperm.slane %v294, 0
      %v311 = vperm.slane %v295, 0
      %v312 = vperm.slane %v296, 0
      %v313 = vperm.slane %v297, 0
      %v314 = vperm.slane %v298, 0
      %v315 = vperm.slane %v299, 0
      %v316 = vmul.f32 %v283, %v308
      %v317 = vmul.f32 %v283, %v309
      %v318 = vmul.f32 %v283, %v310
      %v319 = vmul.f32 %v283, %v311
      %v320 = vmul.f32 %v283, %v312
      %v321 = vmul.f32 %v283, %v313
      %v322 = vmul.f32 %v283, %v314
      %v323 = vmul.f32 %v283, %v315
      %v324 = vmul.f32 %v288, %v308
      %v325 = vmul.f32 %v288, %v309
      %v326 = vmul.f32 %v288, %v310
      %v327 = vmul.f32 %v288, %v311
      %v328 = vmul.f32 %v288, %v312
      %v329 = vmul.f32 %v288, %v313
      %v330 = vmul.f32 %v288, %v314
      %v331 = vmul.f32 %v288, %v315
      %v332 = vadd.f32 %v273, %v316
      %v333 = vadd.f32 %v273, %v317
      %v334 = vadd.f32 %v273, %v318
      %v335 = vadd.f32 %v273, %v319
      %v336 = vadd.f32 %v273, %v320
      %v337 = vadd.f32 %v273, %v321
      %v338 = vadd.f32 %v273, %v322
      %v339 = vadd.f32 %v273, %v323
      %v340 = vadd.f32 %v278, %v324
      %v341 = vadd.f32 %v278, %v325
      %v342 = vadd.f32 %v278, %v326
      %v343 = vadd.f32 %v278, %v327
      %v344 = vadd.f32 %v278, %v328
      %v345 = vadd.f32 %v278, %v329
      %v346 = vadd.f32 %v278, %v330
      %v347 = vadd.f32 %v278, %v331
      %348 = vset.pattern.permute.xlu0 1
      %349 = vperm.xlu0 %348, %v266
      %v350 = vpop.permute.xlu0 %349
      %352 = vset.pattern.permute.xlu0 1
      %353 = vperm.xlu0 %352, %v267
      %v354 = vpop.permute.xlu0 %353
      %v356 = vperm.slane %v264, 1
      %v357 = vperm.slane %v264, 3
      %v358 = vperm.slane %v264, 5
      %v359 = vperm.slane %v264, 7
      %v360 = vperm.slane %v265, 1
      %v361 = vperm.slane %v265, 3
      %v362 = vperm.slane %v265, 5
      %v363 = vperm.slane %v265, 7
      %v372 = vperm.slane %v356, 1
      %v373 = vperm.slane %v357, 1
      %v374 = vperm.slane %v358, 1
      %v375 = vperm.slane %v359, 1
      %v376 = vperm.slane %v360, 1
      %v377 = vperm.slane %v361, 1
      %v378 = vperm.slane %v362, 1
      %v379 = vperm.slane %v363, 1
      %v380 = vmul.f32 %v350, %v372
      %v381 = vmul.f32 %v350, %v373
      %v382 = vmul.f32 %v350, %v374
      %v383 = vmul.f32 %v350, %v375
      %v384 = vmul.f32 %v350, %v376
      %v385 = vmul.f32 %v350, %v377
      %v386 = vmul.f32 %v350, %v378
      %v387 = vmul.f32 %v350, %v379
      %v388 = vmul.f32 %v354, %v372
      %v389 = vmul.f32 %v354, %v373
      %v390 = vmul.f32 %v354, %v374
      %v391 = vmul.f32 %v354, %v375
      %v392 = vmul.f32 %v354, %v376
      %v393 = vmul.f32 %v354, %v377
      %v394 = vmul.f32 %v354, %v378
      %v395 = vmul.f32 %v354, %v379
      %v396 = vadd.f32 %v332, %v380
      %v397 = vadd.f32 %v333, %v381
      %v398 = vadd.f32 %v334, %v382
      %v399 = vadd.f32 %v335, %v383
      %v400 = vadd.f32 %v336, %v384
      %v401 = vadd.f32 %v337, %v385
      %v402 = vadd.f32 %v338, %v386
      %v403 = vadd.f32 %v339, %v387
      %v404 = vadd.f32 %v340, %v388
      %v405 = vadd.f32 %v341, %v389
      %v406 = vadd.f32 %v342, %v390
      %v407 = vadd.f32 %v343, %v391
      %v408 = vadd.f32 %v344, %v392
      %v409 = vadd.f32 %v345, %v393
      %v410 = vadd.f32 %v346, %v394
      %v411 = vadd.f32 %v347, %v395
      %v412 = vmul.f32 %v396, 0.01
      %v413 = vmul.f32 %v397, 0.01
      %v414 = vmul.f32 %v398, 0.01
      %v415 = vmul.f32 %v399, 0.01
      %v416 = vmul.f32 %v400, 0.01
      %v417 = vmul.f32 %v401, 0.01
      %v418 = vmul.f32 %v402, 0.01
      %v419 = vmul.f32 %v403, 0.01
      %v420 = vmul.f32 %v404, 0.01
      %v421 = vmul.f32 %v405, 0.01
      %v422 = vmul.f32 %v406, 0.01
      %v423 = vmul.f32 %v407, 0.01
      %v424 = vmul.f32 %v408, 0.01
      %v425 = vmul.f32 %v409, 0.01
      %v426 = vmul.f32 %v410, 0.01
      %v427 = vmul.f32 %v411, 0.01
      %v428 = vmax.f32 %v396, %v412
      %v429 = vmax.f32 %v397, %v413
      %v430 = vmax.f32 %v398, %v414
      %v431 = vmax.f32 %v399, %v415
      %v432 = vmax.f32 %v400, %v416
      %v433 = vmax.f32 %v401, %v417
      %v434 = vmax.f32 %v402, %v418
      %v435 = vmax.f32 %v403, %v419
      %v436 = vmax.f32 %v404, %v420
      %v437 = vmax.f32 %v405, %v421
      %v438 = vmax.f32 %v406, %v422
      %v439 = vmax.f32 %v407, %v423
      %v440 = vmax.f32 %v408, %v424
      %v441 = vmax.f32 %v409, %v425
      %v442 = vmax.f32 %v410, %v426
      %v443 = vmax.f32 %v411, %v427
      %444 = vxpose.xlu0.b32.start [1/16] %v428, 128
      %445 = vxpose.xlu0.b32.cont [2/16] %v436, 128
      %446 = vxpose.xlu0.b32.cont [3/16] 0.0, 128
      %447 = vxpose.xlu0.b32.cont [4/16] 0.0, 128
      %448 = vxpose.xlu0.b32.cont [5/16] 0.0, 128
      %449 = vxpose.xlu0.b32.cont [6/16] 0.0, 128
      %450 = vxpose.xlu0.b32.cont [7/16] 0.0, 128
      %451 = vxpose.xlu0.b32.cont [8/16] 0.0, 128
      %452 = vxpose.xlu0.b32.cont [9/16] 0.0, 128
      %453 = vxpose.xlu0.b32.cont [10/16] 0.0, 128
      %454 = vxpose.xlu0.b32.cont [11/16] 0.0, 128
      %455 = vxpose.xlu0.b32.cont [12/16] 0.0, 128
      %456 = vxpose.xlu0.b32.cont [13/16] 0.0, 128
      %457 = vxpose.xlu0.b32.cont [14/16] 0.0, 128
      %458 = vxpose.xlu0.b32.cont [15/16] 0.0, 128
      %459 = vxpose.xlu0.b32.end [16/16] 0.0, 128
      %v460 = vpop.trf.xlu0
      %v461 = vpop.trf.xlu0
      %v462 = vpop.trf.xlu0
      %v463 = vpop.trf.xlu0
      %v464 = vpop.trf.xlu0
      %v465 = vpop.trf.xlu0
      %v466 = vpop.trf.xlu0
      %v467 = vpop.trf.xlu0
      %v468 = vpop.trf.xlu0
      %v469 = vpop.trf.xlu0
      %v470 = vpop.trf.xlu0
      %v471 = vpop.trf.xlu0
      %v472 = vpop.trf.xlu0
      %v473 = vpop.trf.xlu0
      %v474 = vpop.trf.xlu0
      %v475 = vpop.trf.xlu0
      %476 = vxpose.xlu0.b32.start [1/16] %v429, 128
      %477 = vxpose.xlu0.b32.cont [2/16] %v437, 128
      %478 = vxpose.xlu0.b32.cont [3/16] 0.0, 128
      %479 = vxpose.xlu0.b32.cont [4/16] 0.0, 128
      %480 = vxpose.xlu0.b32.cont [5/16] 0.0, 128
      %481 = vxpose.xlu0.b32.cont [6/16] 0.0, 128
      %482 = vxpose.xlu0.b32.cont [7/16] 0.0, 128
      %483 = vxpose.xlu0.b32.cont [8/16] 0.0, 128
      %484 = vxpose.xlu0.b32.cont [9/16] 0.0, 128
      %485 = vxpose.xlu0.b32.cont [10/16] 0.0, 128
      %486 = vxpose.xlu0.b32.cont [11/16] 0.0, 128
      %487 = vxpose.xlu0.b32.cont [12/16] 0.0, 128
      %488 = vxpose.xlu0.b32.cont [13/16] 0.0, 128
      %489 = vxpose.xlu0.b32.cont [14/16] 0.0, 128
      %490 = vxpose.xlu0.b32.cont [15/16] 0.0, 128
      %491 = vxpose.xlu0.b32.end [16/16] 0.0, 128
      %v492 = vpop.trf.xlu0
      %v493 = vpop.trf.xlu0
      %v494 = vpop.trf.xlu0
      %v495 = vpop.trf.xlu0
      %v496 = vpop.trf.xlu0
      %v497 = vpop.trf.xlu0
      %v498 = vpop.trf.xlu0
      %v499 = vpop.trf.xlu0
      %v500 = vpop.trf.xlu0
      %v501 = vpop.trf.xlu0
      %v502 = vpop.trf.xlu0
      %v503 = vpop.trf.xlu0
      %v504 = vpop.trf.xlu0
      %v505 = vpop.trf.xlu0
      %v506 = vpop.trf.xlu0
      %v507 = vpop.trf.xlu0
      %508 = vxpose.xlu0.b32.start [1/16] %v430, 128
      %509 = vxpose.xlu0.b32.cont [2/16] %v438, 128
      %510 = vxpose.xlu0.b32.cont [3/16] 0.0, 128
      %511 = vxpose.xlu0.b32.cont [4/16] 0.0, 128
      %512 = vxpose.xlu0.b32.cont [5/16] 0.0, 128
      %513 = vxpose.xlu0.b32.cont [6/16] 0.0, 128
      %514 = vxpose.xlu0.b32.cont [7/16] 0.0, 128
      %515 = vxpose.xlu0.b32.cont [8/16] 0.0, 128
      %516 = vxpose.xlu0.b32.cont [9/16] 0.0, 128
      %517 = vxpose.xlu0.b32.cont [10/16] 0.0, 128
      %518 = vxpose.xlu0.b32.cont [11/16] 0.0, 128
      %519 = vxpose.xlu0.b32.cont [12/16] 0.0, 128
      %520 = vxpose.xlu0.b32.cont [13/16] 0.0, 128
      %521 = vxpose.xlu0.b32.cont [14/16] 0.0, 128
      %522 = vxpose.xlu0.b32.cont [15/16] 0.0, 128
      %523 = vxpose.xlu0.b32.end [16/16] 0.0, 128
      %v524 = vpop.trf.xlu0
      %v525 = vpop.trf.xlu0
      %v526 = vpop.trf.xlu0
      %v527 = vpop.trf.xlu0
      %v528 = vpop.trf.xlu0
      %v529 = vpop.trf.xlu0
      %v530 = vpop.trf.xlu0
      %v531 = vpop.trf.xlu0
      %v532 = vpop.trf.xlu0
      %v533 = vpop.trf.xlu0
      %v534 = vpop.trf.xlu0
      %v535 = vpop.trf.xlu0
      %v536 = vpop.trf.xlu0
      %v537 = vpop.trf.xlu0
      %v538 = vpop.trf.xlu0
      %v539 = vpop.trf.xlu0
      %540 = vxpose.xlu0.b32.start [1/16] %v431, 128
      %541 = vxpose.xlu0.b32.cont [2/16] %v439, 128
      %542 = vxpose.xlu0.b32.cont [3/16] 0.0, 128
      %543 = vxpose.xlu0.b32.cont [4/16] 0.0, 128
      %544 = vxpose.xlu0.b32.cont [5/16] 0.0, 128
      %545 = vxpose.xlu0.b32.cont [6/16] 0.0, 128
      %546 = vxpose.xlu0.b32.cont [7/16] 0.0, 128
      %547 = vxpose.xlu0.b32.cont [8/16] 0.0, 128
      %548 = vxpose.xlu0.b32.cont [9/16] 0.0, 128
      %549 = vxpose.xlu0.b32.cont [10/16] 0.0, 128
      %550 = vxpose.xlu0.b32.cont [11/16] 0.0, 128
      %551 = vxpose.xlu0.b32.cont [12/16] 0.0, 128
      %552 = vxpose.xlu0.b32.cont [13/16] 0.0, 128
      %553 = vxpose.xlu0.b32.cont [14/16] 0.0, 128
      %554 = vxpose.xlu0.b32.cont [15/16] 0.0, 128
      %555 = vxpose.xlu0.b32.end [16/16] 0.0, 128
      %v556 = vpop.trf.xlu0
      %v557 = vpop.trf.xlu0
      %v558 = vpop.trf.xlu0
      %v559 = vpop.trf.xlu0
      %v560 = vpop.trf.xlu0
      %v561 = vpop.trf.xlu0
      %v562 = vpop.trf.xlu0
      %v563 = vpop.trf.xlu0
      %v564 = vpop.trf.xlu0
      %v565 = vpop.trf.xlu0
      %v566 = vpop.trf.xlu0
      %v567 = vpop.trf.xlu0
      %v568 = vpop.trf.xlu0
      %v569 = vpop.trf.xlu0
      %v570 = vpop.trf.xlu0
      %v571 = vpop.trf.xlu0
      %572 = vxpose.xlu0.b32.start [1/16] %v432, 128
      %573 = vxpose.xlu0.b32.cont [2/16] %v440, 128
      %574 = vxpose.xlu0.b32.cont [3/16] 0.0, 128
      %575 = vxpose.xlu0.b32.cont [4/16] 0.0, 128
      %576 = vxpose.xlu0.b32.cont [5/16] 0.0, 128
      %577 = vxpose.xlu0.b32.cont [6/16] 0.0, 128
      %578 = vxpose.xlu0.b32.cont [7/16] 0.0, 128
      %579 = vxpose.xlu0.b32.cont [8/16] 0.0, 128
      %580 = vxpose.xlu0.b32.cont [9/16] 0.0, 128
      %581 = vxpose.xlu0.b32.cont [10/16] 0.0, 128
      %582 = vxpose.xlu0.b32.cont [11/16] 0.0, 128
      %583 = vxpose.xlu0.b32.cont [12/16] 0.0, 128
      %584 = vxpose.xlu0.b32.cont [13/16] 0.0, 128
      %585 = vxpose.xlu0.b32.cont [14/16] 0.0, 128
      %586 = vxpose.xlu0.b32.cont [15/16] 0.0, 128
      %587 = vxpose.xlu0.b32.end [16/16] 0.0, 128
      %v588 = vpop.trf.xlu0
      %v589 = vpop.trf.xlu0
      %v590 = vpop.trf.xlu0
      %v591 = vpop.trf.xlu0
      %v592 = vpop.trf.xlu0
      %v593 = vpop.trf.xlu0
      %v594 = vpop.trf.xlu0
      %v595 = vpop.trf.xlu0
      %v596 = vpop.trf.xlu0
      %v597 = vpop.trf.xlu0
      %v598 = vpop.trf.xlu0
      %v599 = vpop.trf.xlu0
      %v600 = vpop.trf.xlu0
      %v601 = vpop.trf.xlu0
      %v602 = vpop.trf.xlu0
      %v603 = vpop.trf.xlu0
      %604 = vxpose.xlu0.b32.start [1/16] %v433, 128
      %605 = vxpose.xlu0.b32.cont [2/16] %v441, 128
      %606 = vxpose.xlu0.b32.cont [3/16] 0.0, 128
      %607 = vxpose.xlu0.b32.cont [4/16] 0.0, 128
      %608 = vxpose.xlu0.b32.cont [5/16] 0.0, 128
      %609 = vxpose.xlu0.b32.cont [6/16] 0.0, 128
      %610 = vxpose.xlu0.b32.cont [7/16] 0.0, 128
      %611 = vxpose.xlu0.b32.cont [8/16] 0.0, 128
      %612 = vxpose.xlu0.b32.cont [9/16] 0.0, 128
      %613 = vxpose.xlu0.b32.cont [10/16] 0.0, 128
      %614 = vxpose.xlu0.b32.cont [11/16] 0.0, 128
      %615 = vxpose.xlu0.b32.cont [12/16] 0.0, 128
      %616 = vxpose.xlu0.b32.cont [13/16] 0.0, 128
      %617 = vxpose.xlu0.b32.cont [14/16] 0.0, 128
      %618 = vxpose.xlu0.b32.cont [15/16] 0.0, 128
      %619 = vxpose.xlu0.b32.end [16/16] 0.0, 128
      %v620 = vpop.trf.xlu0
      %v621 = vpop.trf.xlu0
      %v622 = vpop.trf.xlu0
      %v623 = vpop.trf.xlu0
      %v624 = vpop.trf.xlu0
      %v625 = vpop.trf.xlu0
      %v626 = vpop.trf.xlu0
      %v627 = vpop.trf.xlu0
      %v628 = vpop.trf.xlu0
      %v629 = vpop.trf.xlu0
      %v630 = vpop.trf.xlu0
      %v631 = vpop.trf.xlu0
      %v632 = vpop.trf.xlu0
      %v633 = vpop.trf.xlu0
      %v634 = vpop.trf.xlu0
      %v635 = vpop.trf.xlu0
      %636 = vxpose.xlu0.b32.start [1/16] %v434, 128
      %637 = vxpose.xlu0.b32.cont [2/16] %v442, 128
      %638 = vxpose.xlu0.b32.cont [3/16] 0.0, 128
      %639 = vxpose.xlu0.b32.cont [4/16] 0.0, 128
      %640 = vxpose.xlu0.b32.cont [5/16] 0.0, 128
      %641 = vxpose.xlu0.b32.cont [6/16] 0.0, 128
      %642 = vxpose.xlu0.b32.cont [7/16] 0.0, 128
      %643 = vxpose.xlu0.b32.cont [8/16] 0.0, 128
      %644 = vxpose.xlu0.b32.cont [9/16] 0.0, 128
      %645 = vxpose.xlu0.b32.cont [10/16] 0.0, 128
      %646 = vxpose.xlu0.b32.cont [11/16] 0.0, 128
      %647 = vxpose.xlu0.b32.cont [12/16] 0.0, 128
      %648 = vxpose.xlu0.b32.cont [13/16] 0.0, 128
      %649 = vxpose.xlu0.b32.cont [14/16] 0.0, 128
      %650 = vxpose.xlu0.b32.cont [15/16] 0.0, 128
      %651 = vxpose.xlu0.b32.end [16/16] 0.0, 128
      %v652 = vpop.trf.xlu0
      %v653 = vpop.trf.xlu0
      %v654 = vpop.trf.xlu0
      %v655 = vpop.trf.xlu0
      %v656 = vpop.trf.xlu0
      %v657 = vpop.trf.xlu0
      %v658 = vpop.trf.xlu0
      %v659 = vpop.trf.xlu0
      %v660 = vpop.trf.xlu0
      %v661 = vpop.trf.xlu0
      %v662 = vpop.trf.xlu0
      %v663 = vpop.trf.xlu0
      %v664 = vpop.trf.xlu0
      %v665 = vpop.trf.xlu0
      %v666 = vpop.trf.xlu0
      %v667 = vpop.trf.xlu0
      %668 = vxpose.xlu0.b32.start [1/16] %v435, 128
      %669 = vxpose.xlu0.b32.cont [2/16] %v443, 128
      %670 = vxpose.xlu0.b32.cont [3/16] 0.0, 128
      %671 = vxpose.xlu0.b32.cont [4/16] 0.0, 128
      %672 = vxpose.xlu0.b32.cont [5/16] 0.0, 128
      %673 = vxpose.xlu0.b32.cont [6/16] 0.0, 128
      %674 = vxpose.xlu0.b32.cont [7/16] 0.0, 128
      %675 = vxpose.xlu0.b32.cont [8/16] 0.0, 128
      %676 = vxpose.xlu0.b32.cont [9/16] 0.0, 128
      %677 = vxpose.xlu0.b32.cont [10/16] 0.0, 128
      %678 = vxpose.xlu0.b32.cont [11/16] 0.0, 128
      %679 = vxpose.xlu0.b32.cont [12/16] 0.0, 128
      %680 = vxpose.xlu0.b32.cont [13/16] 0.0, 128
      %681 = vxpose.xlu0.b32.cont [14/16] 0.0, 128
      %682 = vxpose.xlu0.b32.cont [15/16] 0.0, 128
      %683 = vxpose.xlu0.b32.end [16/16] 0.0, 128
      %v684 = vpop.trf.xlu0
      %v685 = vpop.trf.xlu0
      %v686 = vpop.trf.xlu0
      %v687 = vpop.trf.xlu0
      %v688 = vpop.trf.xlu0
      %v689 = vpop.trf.xlu0
      %v690 = vpop.trf.xlu0
      %v691 = vpop.trf.xlu0
      %v692 = vpop.trf.xlu0
      %v693 = vpop.trf.xlu0
      %v694 = vpop.trf.xlu0
      %v695 = vpop.trf.xlu0
      %v696 = vpop.trf.xlu0
      %v697 = vpop.trf.xlu0
      %v698 = vpop.trf.xlu0
      %v699 = vpop.trf.xlu0
      %v700 = vld [vmem:[%s3] sm:$0xff]
      %v701 = vld [vmem:[%s3 + $0x8] sm:$0xff]
      %v702 = vld [vmem:[%s4] sm:$0x1]
      %v704 = vperm.slane %v702, 0
      %vm706 = vcmask 130048
      %v708 = vsel %vm706, %v460, 0
      %v711 = vsel %vm706, %v461, 0
      %v714 = vsel %vm706, %v462, 0
      %v717 = vsel %vm706, %v463, 0
      %v720 = vsel %vm706, %v464, 0
      %v723 = vsel %vm706, %v465, 0
      %v726 = vsel %vm706, %v466, 0
      %v729 = vsel %vm706, %v467, 0
      %v732 = vsel %vm706, %v468, 0
      %v735 = vsel %vm706, %v469, 0
      %v738 = vsel %vm706, %v470, 0
      %v741 = vsel %vm706, %v471, 0
      %v744 = vsel %vm706, %v472, 0
      %v747 = vsel %vm706, %v473, 0
      %v750 = vsel %vm706, %v474, 0
      %v753 = vsel %vm706, %v475, 0
      %v756 = vsel %vm706, %v492, 0
      %v759 = vsel %vm706, %v493, 0
      %v762 = vsel %vm706, %v494, 0
      %v765 = vsel %vm706, %v495, 0
      %v768 = vsel %vm706, %v496, 0
      %v771 = vsel %vm706, %v497, 0
      %v774 = vsel %vm706, %v498, 0
      %v777 = vsel %vm706, %v499, 0
      %v780 = vsel %vm706, %v500, 0
      %v783 = vsel %vm706, %v501, 0
      %v786 = vsel %vm706, %v502, 0
      %v789 = vsel %vm706, %v503, 0
      %v792 = vsel %vm706, %v504, 0
      %v795 = vsel %vm706, %v505, 0
      %v798 = vsel %vm706, %v506, 0
      %v801 = vsel %vm706, %v507, 0
      %v804 = vsel %vm706, %v524, 0
      %v807 = vsel %vm706, %v525, 0
      %v810 = vsel %vm706, %v526, 0
      %v813 = vsel %vm706, %v527, 0
      %v816 = vsel %vm706, %v528, 0
      %v819 = vsel %vm706, %v529, 0
      %v822 = vsel %vm706, %v530, 0
      %v825 = vsel %vm706, %v531, 0
      %v828 = vsel %vm706, %v532, 0
      %v831 = vsel %vm706, %v533, 0
      %v834 = vsel %vm706, %v534, 0
      %v837 = vsel %vm706, %v535, 0
      %v840 = vsel %vm706, %v536, 0
      %v843 = vsel %vm706, %v537, 0
      %v846 = vsel %vm706, %v538, 0
      %v849 = vsel %vm706, %v539, 0
      %v852 = vsel %vm706, %v556, 0
      %v855 = vsel %vm706, %v557, 0
      %v858 = vsel %vm706, %v558, 0
      %v861 = vsel %vm706, %v559, 0
      %v864 = vsel %vm706, %v560, 0
      %v867 = vsel %vm706, %v561, 0
      %v870 = vsel %vm706, %v562, 0
      %v873 = vsel %vm706, %v563, 0
      %v876 = vsel %vm706, %v564, 0
      %v879 = vsel %vm706, %v565, 0
      %v882 = vsel %vm706, %v566, 0
      %v885 = vsel %vm706, %v567, 0
      %v888 = vsel %vm706, %v568, 0
      %v891 = vsel %vm706, %v569, 0
      %v894 = vsel %vm706, %v570, 0
      %v897 = vsel %vm706, %v571, 0
      %v900 = vsel %vm706, %v588, 0
      %v903 = vsel %vm706, %v589, 0
      %v906 = vsel %vm706, %v590, 0
      %v909 = vsel %vm706, %v591, 0
      %v912 = vsel %vm706, %v592, 0
      %v915 = vsel %vm706, %v593, 0
      %v918 = vsel %vm706, %v594, 0
      %v921 = vsel %vm706, %v595, 0
      %v924 = vsel %vm706, %v596, 0
      %v927 = vsel %vm706, %v597, 0
      %v930 = vsel %vm706, %v598, 0
      %v933 = vsel %vm706, %v599, 0
      %v936 = vsel %vm706, %v600, 0
      %v939 = vsel %vm706, %v601, 0
      %v942 = vsel %vm706, %v602, 0
      %v945 = vsel %vm706, %v603, 0
      %v948 = vsel %vm706, %v620, 0
      %v951 = vsel %vm706, %v621, 0
      %v954 = vsel %vm706, %v622, 0
      %v957 = vsel %vm706, %v623, 0
      %v960 = vsel %vm706, %v624, 0
      %v963 = vsel %vm706, %v625, 0
      %v966 = vsel %vm706, %v626, 0
      %v969 = vsel %vm706, %v627, 0
      %v972 = vsel %vm706, %v628, 0
      %v975 = vsel %vm706, %v629, 0
      %v978 = vsel %vm706, %v630, 0
      %v981 = vsel %vm706, %v631, 0
      %v984 = vsel %vm706, %v632, 0
      %v987 = vsel %vm706, %v633, 0
      %v990 = vsel %vm706, %v634, 0
      %v993 = vsel %vm706, %v635, 0
      %v996 = vsel %vm706, %v652, 0
      %v999 = vsel %vm706, %v653, 0
      %v1002 = vsel %vm706, %v654, 0
      %v1005 = vsel %vm706, %v655, 0
      %v1008 = vsel %vm706, %v656, 0
      %v1011 = vsel %vm706, %v657, 0
      %v1014 = vsel %vm706, %v658, 0
      %v1017 = vsel %vm706, %v659, 0
      %v1020 = vsel %vm706, %v660, 0
      %v1023 = vsel %vm706, %v661, 0
      %v1026 = vsel %vm706, %v662, 0
      %v1029 = vsel %vm706, %v663, 0
      %v1032 = vsel %vm706, %v664, 0
      %v1035 = vsel %vm706, %v665, 0
      %v1038 = vsel %vm706, %v666, 0
      %v1041 = vsel %vm706, %v667, 0
      %v1044 = vsel %vm706, %v684, 0
      %v1047 = vsel %vm706, %v685, 0
      %v1050 = vsel %vm706, %v686, 0
      %v1053 = vsel %vm706, %v687, 0
      %v1056 = vsel %vm706, %v688, 0
      %v1059 = vsel %vm706, %v689, 0
      %v1062 = vsel %vm706, %v690, 0
      %v1065 = vsel %vm706, %v691, 0
      %v1068 = vsel %vm706, %v692, 0
      %v1071 = vsel %vm706, %v693, 0
      %v1074 = vsel %vm706, %v694, 0
      %v1077 = vsel %vm706, %v695, 0
      %v1080 = vsel %vm706, %v696, 0
      %v1083 = vsel %vm706, %v697, 0
      %v1086 = vsel %vm706, %v698, 0
      %v1089 = vsel %vm706, %v699, 0
      %1091 = vmatpush.msra.mxu0 0.0
      %1092 = vmatpush.msra.mxu0 0.0
      %1093 = vmatpush.msra.mxu0 0.0
      %1094 = vmatpush.msra.mxu0 0.0
      %1095 = vmatpush.msra.mxu0 0.0
      %1096 = vmatpush.msra.mxu0 0.0
      %1097 = vmatpush.msra.mxu0 0.0
      %1098 = vmatpush.msra.mxu0 0.0
      %1099 = vmatpush.msra.mxu0 0.0
      %1100 = vmatpush.msra.mxu0 0.0
      %1101 = vmatpush.msra.mxu0 0.0
      %1102 = vmatpush.msra.mxu0 0.0
      %1103 = vmatpush.msra.mxu0 0.0
      %1104 = vmatpush.msra.mxu0 0.0
      %1105 = vmatpush.msra.mxu0 %v701
      %1106 = vmatpush.msra.mxu0 %v700
      %1107 = vmatmul.f32.gmra.mxu0 %v708
      %v1108 = vpop.f32.mrf.mxu0
      %v1109 = vadd.f32 %v704, %v1108
      %1110 = vmatmul.f32.gmra.mxu0 %v711
      %v1111 = vpop.f32.mrf.mxu0
      %v1112 = vadd.f32 %v704, %v1111
      %1113 = vmatmul.f32.gmra.mxu0 %v714
      %v1114 = vpop.f32.mrf.mxu0
      %v1115 = vadd.f32 %v704, %v1114
      %1116 = vmatmul.f32.gmra.mxu0 %v717
      %v1117 = vpop.f32.mrf.mxu0
      %v1118 = vadd.f32 %v704, %v1117
      %1119 = vmatmul.f32.gmra.mxu0 %v720
      %v1120 = vpop.f32.mrf.mxu0
      %v1121 = vadd.f32 %v704, %v1120
      %1122 = vmatmul.f32.gmra.mxu0 %v723
      %v1123 = vpop.f32.mrf.mxu0
      %v1124 = vadd.f32 %v704, %v1123
      %1125 = vmatmul.f32.gmra.mxu0 %v726
      %v1126 = vpop.f32.mrf.mxu0
      %v1127 = vadd.f32 %v704, %v1126
      %1128 = vmatmul.f32.gmra.mxu0 %v729
      %v1129 = vpop.f32.mrf.mxu0
      %v1130 = vadd.f32 %v704, %v1129
      %1131 = vmatmul.f32.gmra.mxu0 %v732
      %v1132 = vpop.f32.mrf.mxu0
      %v1133 = vadd.f32 %v704, %v1132
      %1134 = vmatmul.f32.gmra.mxu0 %v735
      %v1135 = vpop.f32.mrf.mxu0
      %v1136 = vadd.f32 %v704, %v1135
      %1137 = vmatmul.f32.gmra.mxu0 %v738
      %v1138 = vpop.f32.mrf.mxu0
      %v1139 = vadd.f32 %v704, %v1138
      %1140 = vmatmul.f32.gmra.mxu0 %v741
      %v1141 = vpop.f32.mrf.mxu0
      %v1142 = vadd.f32 %v704, %v1141
      %1143 = vmatmul.f32.gmra.mxu0 %v744
      %v1144 = vpop.f32.mrf.mxu0
      %v1145 = vadd.f32 %v704, %v1144
      %1146 = vmatmul.f32.gmra.mxu0 %v747
      %v1147 = vpop.f32.mrf.mxu0
      %v1148 = vadd.f32 %v704, %v1147
      %1149 = vmatmul.f32.gmra.mxu0 %v750
      %v1150 = vpop.f32.mrf.mxu0
      %v1151 = vadd.f32 %v704, %v1150
      %1152 = vmatmul.f32.gmra.mxu0 %v753
      %v1153 = vpop.f32.mrf.mxu0
      %v1154 = vadd.f32 %v704, %v1153
      %1155 = vmatmul.f32.gmra.mxu0 %v756
      %v1156 = vpop.f32.mrf.mxu0
      %v1157 = vadd.f32 %v704, %v1156
      %1158 = vmatmul.f32.gmra.mxu0 %v759
      %v1159 = vpop.f32.mrf.mxu0
      %v1160 = vadd.f32 %v704, %v1159
      %1161 = vmatmul.f32.gmra.mxu0 %v762
      %v1162 = vpop.f32.mrf.mxu0
      %v1163 = vadd.f32 %v704, %v1162
      %1164 = vmatmul.f32.gmra.mxu0 %v765
      %v1165 = vpop.f32.mrf.mxu0
      %v1166 = vadd.f32 %v704, %v1165
      %1167 = vmatmul.f32.gmra.mxu0 %v768
      %v1168 = vpop.f32.mrf.mxu0
      %v1169 = vadd.f32 %v704, %v1168
      %1170 = vmatmul.f32.gmra.mxu0 %v771
      %v1171 = vpop.f32.mrf.mxu0
      %v1172 = vadd.f32 %v704, %v1171
      %1173 = vmatmul.f32.gmra.mxu0 %v774
      %v1174 = vpop.f32.mrf.mxu0
      %v1175 = vadd.f32 %v704, %v1174
      %1176 = vmatmul.f32.gmra.mxu0 %v777
      %v1177 = vpop.f32.mrf.mxu0
      %v1178 = vadd.f32 %v704, %v1177
      %1179 = vmatmul.f32.gmra.mxu0 %v780
      %v1180 = vpop.f32.mrf.mxu0
      %v1181 = vadd.f32 %v704, %v1180
      %1182 = vmatmul.f32.gmra.mxu0 %v783
      %v1183 = vpop.f32.mrf.mxu0
      %v1184 = vadd.f32 %v704, %v1183
      %1185 = vmatmul.f32.gmra.mxu0 %v786
      %v1186 = vpop.f32.mrf.mxu0
      %v1187 = vadd.f32 %v704, %v1186
      %1188 = vmatmul.f32.gmra.mxu0 %v789
      %v1189 = vpop.f32.mrf.mxu0
      %v1190 = vadd.f32 %v704, %v1189
      %1191 = vmatmul.f32.gmra.mxu0 %v792
      %v1192 = vpop.f32.mrf.mxu0
      %v1193 = vadd.f32 %v704, %v1192
      %1194 = vmatmul.f32.gmra.mxu0 %v795
      %v1195 = vpop.f32.mrf.mxu0
      %v1196 = vadd.f32 %v704, %v1195
      %1197 = vmatmul.f32.gmra.mxu0 %v798
      %v1198 = vpop.f32.mrf.mxu0
      %v1199 = vadd.f32 %v704, %v1198
      %1200 = vmatmul.f32.gmra.mxu0 %v801
      %v1201 = vpop.f32.mrf.mxu0
      %v1202 = vadd.f32 %v704, %v1201
      %1203 = vmatmul.f32.gmra.mxu0 %v804
      %v1204 = vpop.f32.mrf.mxu0
      %v1205 = vadd.f32 %v704, %v1204
      %1206 = vmatmul.f32.gmra.mxu0 %v807
      %v1207 = vpop.f32.mrf.mxu0
      %v1208 = vadd.f32 %v704, %v1207
      %1209 = vmatmul.f32.gmra.mxu0 %v810
      %v1210 = vpop.f32.mrf.mxu0
      %v1211 = vadd.f32 %v704, %v1210
      %1212 = vmatmul.f32.gmra.mxu0 %v813
      %v1213 = vpop.f32.mrf.mxu0
      %v1214 = vadd.f32 %v704, %v1213
      %1215 = vmatmul.f32.gmra.mxu0 %v816
      %v1216 = vpop.f32.mrf.mxu0
      %v1217 = vadd.f32 %v704, %v1216
      %1218 = vmatmul.f32.gmra.mxu0 %v819
      %v1219 = vpop.f32.mrf.mxu0
      %v1220 = vadd.f32 %v704, %v1219
      %1221 = vmatmul.f32.gmra.mxu0 %v822
      %v1222 = vpop.f32.mrf.mxu0
      %v1223 = vadd.f32 %v704, %v1222
      %1224 = vmatmul.f32.gmra.mxu0 %v825
      %v1225 = vpop.f32.mrf.mxu0
      %v1226 = vadd.f32 %v704, %v1225
      %1227 = vmatmul.f32.gmra.mxu0 %v828
      %v1228 = vpop.f32.mrf.mxu0
      %v1229 = vadd.f32 %v704, %v1228
      %1230 = vmatmul.f32.gmra.mxu0 %v831
      %v1231 = vpop.f32.mrf.mxu0
      %v1232 = vadd.f32 %v704, %v1231
      %1233 = vmatmul.f32.gmra.mxu0 %v834
      %v1234 = vpop.f32.mrf.mxu0
      %v1235 = vadd.f32 %v704, %v1234
      %1236 = vmatmul.f32.gmra.mxu0 %v837
      %v1237 = vpop.f32.mrf.mxu0
      %v1238 = vadd.f32 %v704, %v1237
      %1239 = vmatmul.f32.gmra.mxu0 %v840
      %v1240 = vpop.f32.mrf.mxu0
      %v1241 = vadd.f32 %v704, %v1240
      %1242 = vmatmul.f32.gmra.mxu0 %v843
      %v1243 = vpop.f32.mrf.mxu0
      %v1244 = vadd.f32 %v704, %v1243
      %1245 = vmatmul.f32.gmra.mxu0 %v846
      %v1246 = vpop.f32.mrf.mxu0
      %v1247 = vadd.f32 %v704, %v1246
      %1248 = vmatmul.f32.gmra.mxu0 %v849
      %v1249 = vpop.f32.mrf.mxu0
      %v1250 = vadd.f32 %v704, %v1249
      %1251 = vmatmul.f32.gmra.mxu0 %v852
      %v1252 = vpop.f32.mrf.mxu0
      %v1253 = vadd.f32 %v704, %v1252
      %1254 = vmatmul.f32.gmra.mxu0 %v855
      %v1255 = vpop.f32.mrf.mxu0
      %v1256 = vadd.f32 %v704, %v1255
      %1257 = vmatmul.f32.gmra.mxu0 %v858
      %v1258 = vpop.f32.mrf.mxu0
      %v1259 = vadd.f32 %v704, %v1258
      %1260 = vmatmul.f32.gmra.mxu0 %v861
      %v1261 = vpop.f32.mrf.mxu0
      %v1262 = vadd.f32 %v704, %v1261
      %1263 = vmatmul.f32.gmra.mxu0 %v864
      %v1264 = vpop.f32.mrf.mxu0
      %v1265 = vadd.f32 %v704, %v1264
      %1266 = vmatmul.f32.gmra.mxu0 %v867
      %v1267 = vpop.f32.mrf.mxu0
      %v1268 = vadd.f32 %v704, %v1267
      %1269 = vmatmul.f32.gmra.mxu0 %v870
      %v1270 = vpop.f32.mrf.mxu0
      %v1271 = vadd.f32 %v704, %v1270
      %1272 = vmatmul.f32.gmra.mxu0 %v873
      %v1273 = vpop.f32.mrf.mxu0
      %v1274 = vadd.f32 %v704, %v1273
      %1275 = vmatmul.f32.gmra.mxu0 %v876
      %v1276 = vpop.f32.mrf.mxu0
      %v1277 = vadd.f32 %v704, %v1276
      %1278 = vmatmul.f32.gmra.mxu0 %v879
      %v1279 = vpop.f32.mrf.mxu0
      %v1280 = vadd.f32 %v704, %v1279
      %1281 = vmatmul.f32.gmra.mxu0 %v882
      %v1282 = vpop.f32.mrf.mxu0
      %v1283 = vadd.f32 %v704, %v1282
      %1284 = vmatmul.f32.gmra.mxu0 %v885
      %v1285 = vpop.f32.mrf.mxu0
      %v1286 = vadd.f32 %v704, %v1285
      %1287 = vmatmul.f32.gmra.mxu0 %v888
      %v1288 = vpop.f32.mrf.mxu0
      %v1289 = vadd.f32 %v704, %v1288
      %1290 = vmatmul.f32.gmra.mxu0 %v891
      %v1291 = vpop.f32.mrf.mxu0
      %v1292 = vadd.f32 %v704, %v1291
      %1293 = vmatmul.f32.gmra.mxu0 %v894
      %v1294 = vpop.f32.mrf.mxu0
      %v1295 = vadd.f32 %v704, %v1294
      %1296 = vmatmul.f32.gmra.mxu0 %v897
      %v1297 = vpop.f32.mrf.mxu0
      %v1298 = vadd.f32 %v704, %v1297
      %1299 = vmatmul.f32.gmra.mxu0 %v900
      %v1300 = vpop.f32.mrf.mxu0
      %v1301 = vadd.f32 %v704, %v1300
      %1302 = vmatmul.f32.gmra.mxu0 %v903
      %v1303 = vpop.f32.mrf.mxu0
      %v1304 = vadd.f32 %v704, %v1303
      %1305 = vmatmul.f32.gmra.mxu0 %v906
      %v1306 = vpop.f32.mrf.mxu0
      %v1307 = vadd.f32 %v704, %v1306
      %1308 = vmatmul.f32.gmra.mxu0 %v909
      %v1309 = vpop.f32.mrf.mxu0
      %v1310 = vadd.f32 %v704, %v1309
      %1311 = vmatmul.f32.gmra.mxu0 %v912
      %v1312 = vpop.f32.mrf.mxu0
      %v1313 = vadd.f32 %v704, %v1312
      %1314 = vmatmul.f32.gmra.mxu0 %v915
      %v1315 = vpop.f32.mrf.mxu0
      %v1316 = vadd.f32 %v704, %v1315
      %1317 = vmatmul.f32.gmra.mxu0 %v918
      %v1318 = vpop.f32.mrf.mxu0
      %v1319 = vadd.f32 %v704, %v1318
      %1320 = vmatmul.f32.gmra.mxu0 %v921
      %v1321 = vpop.f32.mrf.mxu0
      %v1322 = vadd.f32 %v704, %v1321
      %1323 = vmatmul.f32.gmra.mxu0 %v924
      %v1324 = vpop.f32.mrf.mxu0
      %v1325 = vadd.f32 %v704, %v1324
      %1326 = vmatmul.f32.gmra.mxu0 %v927
      %v1327 = vpop.f32.mrf.mxu0
      %v1328 = vadd.f32 %v704, %v1327
      %1329 = vmatmul.f32.gmra.mxu0 %v930
      %v1330 = vpop.f32.mrf.mxu0
      %v1331 = vadd.f32 %v704, %v1330
      %1332 = vmatmul.f32.gmra.mxu0 %v933
      %v1333 = vpop.f32.mrf.mxu0
      %v1334 = vadd.f32 %v704, %v1333
      %1335 = vmatmul.f32.gmra.mxu0 %v936
      %v1336 = vpop.f32.mrf.mxu0
      %v1337 = vadd.f32 %v704, %v1336
      %1338 = vmatmul.f32.gmra.mxu0 %v939
      %v1339 = vpop.f32.mrf.mxu0
      %v1340 = vadd.f32 %v704, %v1339
      %1341 = vmatmul.f32.gmra.mxu0 %v942
      %v1342 = vpop.f32.mrf.mxu0
      %v1343 = vadd.f32 %v704, %v1342
      %1344 = vmatmul.f32.gmra.mxu0 %v945
      %v1345 = vpop.f32.mrf.mxu0
      %v1346 = vadd.f32 %v704, %v1345
      %1347 = vmatmul.f32.gmra.mxu0 %v948
      %v1348 = vpop.f32.mrf.mxu0
      %v1349 = vadd.f32 %v704, %v1348
      %1350 = vmatmul.f32.gmra.mxu0 %v951
      %v1351 = vpop.f32.mrf.mxu0
      %v1352 = vadd.f32 %v704, %v1351
      %1353 = vmatmul.f32.gmra.mxu0 %v954
      %v1354 = vpop.f32.mrf.mxu0
      %v1355 = vadd.f32 %v704, %v1354
      %1356 = vmatmul.f32.gmra.mxu0 %v957
      %v1357 = vpop.f32.mrf.mxu0
      %v1358 = vadd.f32 %v704, %v1357
      %1359 = vmatmul.f32.gmra.mxu0 %v960
      %v1360 = vpop.f32.mrf.mxu0
      %v1361 = vadd.f32 %v704, %v1360
      %1362 = vmatmul.f32.gmra.mxu0 %v963
      %v1363 = vpop.f32.mrf.mxu0
      %v1364 = vadd.f32 %v704, %v1363
      %1365 = vmatmul.f32.gmra.mxu0 %v966
      %v1366 = vpop.f32.mrf.mxu0
      %v1367 = vadd.f32 %v704, %v1366
      %1368 = vmatmul.f32.gmra.mxu0 %v969
      %v1369 = vpop.f32.mrf.mxu0
      %v1370 = vadd.f32 %v704, %v1369
      %1371 = vmatmul.f32.gmra.mxu0 %v972
      %v1372 = vpop.f32.mrf.mxu0
      %v1373 = vadd.f32 %v704, %v1372
      %1374 = vmatmul.f32.gmra.mxu0 %v975
      %v1375 = vpop.f32.mrf.mxu0
      %v1376 = vadd.f32 %v704, %v1375
      %1377 = vmatmul.f32.gmra.mxu0 %v978
      %v1378 = vpop.f32.mrf.mxu0
      %v1379 = vadd.f32 %v704, %v1378
      %1380 = vmatmul.f32.gmra.mxu0 %v981
      %v1381 = vpop.f32.mrf.mxu0
      %v1382 = vadd.f32 %v704, %v1381
      %1383 = vmatmul.f32.gmra.mxu0 %v984
      %v1384 = vpop.f32.mrf.mxu0
      %v1385 = vadd.f32 %v704, %v1384
      %1386 = vmatmul.f32.gmra.mxu0 %v987
      %v1387 = vpop.f32.mrf.mxu0
      %v1388 = vadd.f32 %v704, %v1387
      %1389 = vmatmul.f32.gmra.mxu0 %v990
      %v1390 = vpop.f32.mrf.mxu0
      %v1391 = vadd.f32 %v704, %v1390
      %1392 = vmatmul.f32.gmra.mxu0 %v993
      %v1393 = vpop.f32.mrf.mxu0
      %v1394 = vadd.f32 %v704, %v1393
      %1395 = vmatmul.f32.gmra.mxu0 %v996
      %v1396 = vpop.f32.mrf.mxu0
      %v1397 = vadd.f32 %v704, %v1396
      %1398 = vmatmul.f32.gmra.mxu0 %v999
      %v1399 = vpop.f32.mrf.mxu0
      %v1400 = vadd.f32 %v704, %v1399
      %1401 = vmatmul.f32.gmra.mxu0 %v1002
      %v1402 = vpop.f32.mrf.mxu0
      %v1403 = vadd.f32 %v704, %v1402
      %1404 = vmatmul.f32.gmra.mxu0 %v1005
      %v1405 = vpop.f32.mrf.mxu0
      %v1406 = vadd.f32 %v704, %v1405
      %1407 = vmatmul.f32.gmra.mxu0 %v1008
      %v1408 = vpop.f32.mrf.mxu0
      %v1409 = vadd.f32 %v704, %v1408
      %1410 = vmatmul.f32.gmra.mxu0 %v1011
      %v1411 = vpop.f32.mrf.mxu0
      %v1412 = vadd.f32 %v704, %v1411
      %1413 = vmatmul.f32.gmra.mxu0 %v1014
      %v1414 = vpop.f32.mrf.mxu0
      %v1415 = vadd.f32 %v704, %v1414
      %1416 = vmatmul.f32.gmra.mxu0 %v1017
      %v1417 = vpop.f32.mrf.mxu0
      %v1418 = vadd.f32 %v704, %v1417
      %1419 = vmatmul.f32.gmra.mxu0 %v1020
      %v1420 = vpop.f32.mrf.mxu0
      %v1421 = vadd.f32 %v704, %v1420
      %1422 = vmatmul.f32.gmra.mxu0 %v1023
      %v1423 = vpop.f32.mrf.mxu0
      %v1424 = vadd.f32 %v704, %v1423
      %1425 = vmatmul.f32.gmra.mxu0 %v1026
      %v1426 = vpop.f32.mrf.mxu0
      %v1427 = vadd.f32 %v704, %v1426
      %1428 = vmatmul.f32.gmra.mxu0 %v1029
      %v1429 = vpop.f32.mrf.mxu0
      %v1430 = vadd.f32 %v704, %v1429
      %1431 = vmatmul.f32.gmra.mxu0 %v1032
      %v1432 = vpop.f32.mrf.mxu0
      %v1433 = vadd.f32 %v704, %v1432
      %1434 = vmatmul.f32.gmra.mxu0 %v1035
      %v1435 = vpop.f32.mrf.mxu0
      %v1436 = vadd.f32 %v704, %v1435
      %1437 = vmatmul.f32.gmra.mxu0 %v1038
      %v1438 = vpop.f32.mrf.mxu0
      %v1439 = vadd.f32 %v704, %v1438
      %1440 = vmatmul.f32.gmra.mxu0 %v1041
      %v1441 = vpop.f32.mrf.mxu0
      %v1442 = vadd.f32 %v704, %v1441
      %1443 = vmatmul.f32.gmra.mxu0 %v1044
      %v1444 = vpop.f32.mrf.mxu0
      %v1445 = vadd.f32 %v704, %v1444
      %1446 = vmatmul.f32.gmra.mxu0 %v1047
      %v1447 = vpop.f32.mrf.mxu0
      %v1448 = vadd.f32 %v704, %v1447
      %1449 = vmatmul.f32.gmra.mxu0 %v1050
      %v1450 = vpop.f32.mrf.mxu0
      %v1451 = vadd.f32 %v704, %v1450
      %1452 = vmatmul.f32.gmra.mxu0 %v1053
      %v1453 = vpop.f32.mrf.mxu0
      %v1454 = vadd.f32 %v704, %v1453
      %1455 = vmatmul.f32.gmra.mxu0 %v1056
      %v1456 = vpop.f32.mrf.mxu0
      %v1457 = vadd.f32 %v704, %v1456
      %1458 = vmatmul.f32.gmra.mxu0 %v1059
      %v1459 = vpop.f32.mrf.mxu0
      %v1460 = vadd.f32 %v704, %v1459
      %1461 = vmatmul.f32.gmra.mxu0 %v1062
      %v1462 = vpop.f32.mrf.mxu0
      %v1463 = vadd.f32 %v704, %v1462
      %1464 = vmatmul.f32.gmra.mxu0 %v1065
      %v1465 = vpop.f32.mrf.mxu0
      %v1466 = vadd.f32 %v704, %v1465
      %1467 = vmatmul.f32.gmra.mxu0 %v1068
      %v1468 = vpop.f32.mrf.mxu0
      %v1469 = vadd.f32 %v704, %v1468
      %1470 = vmatmul.f32.gmra.mxu0 %v1071
      %v1471 = vpop.f32.mrf.mxu0
      %v1472 = vadd.f32 %v704, %v1471
      %1473 = vmatmul.f32.gmra.mxu0 %v1074
      %v1474 = vpop.f32.mrf.mxu0
      %v1475 = vadd.f32 %v704, %v1474
      %1476 = vmatmul.f32.gmra.mxu0 %v1077
      %v1477 = vpop.f32.mrf.mxu0
      %v1478 = vadd.f32 %v704, %v1477
      %1479 = vmatmul.f32.gmra.mxu0 %v1080
      %v1480 = vpop.f32.mrf.mxu0
      %v1481 = vadd.f32 %v704, %v1480
      %1482 = vmatmul.f32.gmra.mxu0 %v1083
      %v1483 = vpop.f32.mrf.mxu0
      %v1484 = vadd.f32 %v704, %v1483
      %1485 = vmatmul.f32.gmra.mxu0 %v1086
      %v1486 = vpop.f32.mrf.mxu0
      %v1487 = vadd.f32 %v704, %v1486
      %1488 = vmatmul.f32.gmra.mxu0 %v1089
      %v1489 = vpop.f32.mrf.mxu0
      %v1490 = vadd.f32 %v704, %v1489
      %1491 = vdwg.mxu0
      %vm1492 = vcmask 162816
      %1493 = vst.msk [vmem:[%s262] sm:$0xff] %vm1492, %v1109
      %1494 = vst.msk [vmem:[%s262 + $0x8] sm:$0xff] %vm1492, %v1112
      %1495 = vst.msk [vmem:[%s262 + $0x10] sm:$0xff] %vm1492, %v1115
      %1496 = vst.msk [vmem:[%s262 + $0x18] sm:$0xff] %vm1492, %v1118
      %1497 = vst.msk [vmem:[%s262 + $0x20] sm:$0xff] %vm1492, %v1121
      %1498 = vst.msk [vmem:[%s262 + $0x28] sm:$0xff] %vm1492, %v1124
      %1499 = vst.msk [vmem:[%s262 + $0x30] sm:$0xff] %vm1492, %v1127
      %1500 = vst.msk [vmem:[%s262 + $0x38] sm:$0xff] %vm1492, %v1130
      %1501 = vst.msk [vmem:[%s262 + $0x40] sm:$0xff] %vm1492, %v1133
      %1502 = vst.msk [vmem:[%s262 + $0x48] sm:$0xff] %vm1492, %v1136
      %1503 = vst.msk [vmem:[%s262 + $0x50] sm:$0xff] %vm1492, %v1139
      %1504 = vst.msk [vmem:[%s262 + $0x58] sm:$0xff] %vm1492, %v1142
      %1505 = vst.msk [vmem:[%s262 + $0x60] sm:$0xff] %vm1492, %v1145
      %1506 = vst.msk [vmem:[%s262 + $0x68] sm:$0xff] %vm1492, %v1148
      %1507 = vst.msk [vmem:[%s262 + $0x70] sm:$0xff] %vm1492, %v1151
      %1508 = vst.msk [vmem:[%s262 + $0x78] sm:$0xff] %vm1492, %v1154
      %1509 = vst.msk [vmem:[%s262 + $0x80] sm:$0xff] %vm1492, %v1157
      %1510 = vst.msk [vmem:[%s262 + $0x88] sm:$0xff] %vm1492, %v1160
      %1511 = vst.msk [vmem:[%s262 + $0x90] sm:$0xff] %vm1492, %v1163
      %1512 = vst.msk [vmem:[%s262 + $0x98] sm:$0xff] %vm1492, %v1166
      %1513 = vst.msk [vmem:[%s262 + $0xa0] sm:$0xff] %vm1492, %v1169
      %1514 = vst.msk [vmem:[%s262 + $0xa8] sm:$0xff] %vm1492, %v1172
      %1515 = vst.msk [vmem:[%s262 + $0xb0] sm:$0xff] %vm1492, %v1175
      %1516 = vst.msk [vmem:[%s262 + $0xb8] sm:$0xff] %vm1492, %v1178
      %1517 = vst.msk [vmem:[%s262 + $0xc0] sm:$0xff] %vm1492, %v1181
      %1518 = vst.msk [vmem:[%s262 + $0xc8] sm:$0xff] %vm1492, %v1184
      %1519 = vst.msk [vmem:[%s262 + $0xd0] sm:$0xff] %vm1492, %v1187
      %1520 = vst.msk [vmem:[%s262 + $0xd8] sm:$0xff] %vm1492, %v1190
      %1521 = vst.msk [vmem:[%s262 + $0xe0] sm:$0xff] %vm1492, %v1193
      %1522 = vst.msk [vmem:[%s262 + $0xe8] sm:$0xff] %vm1492, %v1196
      %1523 = vst.msk [vmem:[%s262 + $0xf0] sm:$0xff] %vm1492, %v1199
      %1524 = vst.msk [vmem:[%s262 + $0xf8] sm:$0xff] %vm1492, %v1202
      %1525 = vst.msk [vmem:[%s262 + $0x100] sm:$0xff] %vm1492, %v1205
      %1526 = vst.msk [vmem:[%s262 + $0x108] sm:$0xff] %vm1492, %v1208
      %1527 = vst.msk [vmem:[%s262 + $0x110] sm:$0xff] %vm1492, %v1211
      %1528 = vst.msk [vmem:[%s262 + $0x118] sm:$0xff] %vm1492, %v1214
      %1529 = vst.msk [vmem:[%s262 + $0x120] sm:$0xff] %vm1492, %v1217
      %1530 = vst.msk [vmem:[%s262 + $0x128] sm:$0xff] %vm1492, %v1220
      %1531 = vst.msk [vmem:[%s262 + $0x130] sm:$0xff] %vm1492, %v1223
      %1532 = vst.msk [vmem:[%s262 + $0x138] sm:$0xff] %vm1492, %v1226
      %1533 = vst.msk [vmem:[%s262 + $0x140] sm:$0xff] %vm1492, %v1229
      %1534 = vst.msk [vmem:[%s262 + $0x148] sm:$0xff] %vm1492, %v1232
      %1535 = vst.msk [vmem:[%s262 + $0x150] sm:$0xff] %vm1492, %v1235
      %1536 = vst.msk [vmem:[%s262 + $0x158] sm:$0xff] %vm1492, %v1238
      %1537 = vst.msk [vmem:[%s262 + $0x160] sm:$0xff] %vm1492, %v1241
      %1538 = vst.msk [vmem:[%s262 + $0x168] sm:$0xff] %vm1492, %v1244
      %1539 = vst.msk [vmem:[%s262 + $0x170] sm:$0xff] %vm1492, %v1247
      %1540 = vst.msk [vmem:[%s262 + $0x178] sm:$0xff] %vm1492, %v1250
      %1541 = vst.msk [vmem:[%s262 + $0x180] sm:$0xff] %vm1492, %v1253
      %1542 = vst.msk [vmem:[%s262 + $0x188] sm:$0xff] %vm1492, %v1256
      %1543 = vst.msk [vmem:[%s262 + $0x190] sm:$0xff] %vm1492, %v1259
      %1544 = vst.msk [vmem:[%s262 + $0x198] sm:$0xff] %vm1492, %v1262
      %1545 = vst.msk [vmem:[%s262 + $0x1a0] sm:$0xff] %vm1492, %v1265
      %1546 = vst.msk [vmem:[%s262 + $0x1a8] sm:$0xff] %vm1492, %v1268
      %1547 = vst.msk [vmem:[%s262 + $0x1b0] sm:$0xff] %vm1492, %v1271
      %1548 = vst.msk [vmem:[%s262 + $0x1b8] sm:$0xff] %vm1492, %v1274
      %1549 = vst.msk [vmem:[%s262 + $0x1c0] sm:$0xff] %vm1492, %v1277
      %1550 = vst.msk [vmem:[%s262 + $0x1c8] sm:$0xff] %vm1492, %v1280
      %1551 = vst.msk [vmem:[%s262 + $0x1d0] sm:$0xff] %vm1492, %v1283
      %1552 = vst.msk [vmem:[%s262 + $0x1d8] sm:$0xff] %vm1492, %v1286
      %1553 = vst.msk [vmem:[%s262 + $0x1e0] sm:$0xff] %vm1492, %v1289
      %1554 = vst.msk [vmem:[%s262 + $0x1e8] sm:$0xff] %vm1492, %v1292
      %1555 = vst.msk [vmem:[%s262 + $0x1f0] sm:$0xff] %vm1492, %v1295
      %1556 = vst.msk [vmem:[%s262 + $0x1f8] sm:$0xff] %vm1492, %v1298
      %1557 = vst.msk [vmem:[%s262 + $0x200] sm:$0xff] %vm1492, %v1301
      %1558 = vst.msk [vmem:[%s262 + $0x208] sm:$0xff] %vm1492, %v1304
      %1559 = vst.msk [vmem:[%s262 + $0x210] sm:$0xff] %vm1492, %v1307
      %1560 = vst.msk [vmem:[%s262 + $0x218] sm:$0xff] %vm1492, %v1310
      %1561 = vst.msk [vmem:[%s262 + $0x220] sm:$0xff] %vm1492, %v1313
      %1562 = vst.msk [vmem:[%s262 + $0x228] sm:$0xff] %vm1492, %v1316
      %1563 = vst.msk [vmem:[%s262 + $0x230] sm:$0xff] %vm1492, %v1319
      %1564 = vst.msk [vmem:[%s262 + $0x238] sm:$0xff] %vm1492, %v1322
      %1565 = vst.msk [vmem:[%s262 + $0x240] sm:$0xff] %vm1492, %v1325
      %1566 = vst.msk [vmem:[%s262 + $0x248] sm:$0xff] %vm1492, %v1328
      %1567 = vst.msk [vmem:[%s262 + $0x250] sm:$0xff] %vm1492, %v1331
      %1568 = vst.msk [vmem:[%s262 + $0x258] sm:$0xff] %vm1492, %v1334
      %1569 = vst.msk [vmem:[%s262 + $0x260] sm:$0xff] %vm1492, %v1337
      %1570 = vst.msk [vmem:[%s262 + $0x268] sm:$0xff] %vm1492, %v1340
      %1571 = vst.msk [vmem:[%s262 + $0x270] sm:$0xff] %vm1492, %v1343
      %1572 = vst.msk [vmem:[%s262 + $0x278] sm:$0xff] %vm1492, %v1346
      %1573 = vst.msk [vmem:[%s262 + $0x280] sm:$0xff] %vm1492, %v1349
      %1574 = vst.msk [vmem:[%s262 + $0x288] sm:$0xff] %vm1492, %v1352
      %1575 = vst.msk [vmem:[%s262 + $0x290] sm:$0xff] %vm1492, %v1355
      %1576 = vst.msk [vmem:[%s262 + $0x298] sm:$0xff] %vm1492, %v1358
      %1577 = vst.msk [vmem:[%s262 + $0x2a0] sm:$0xff] %vm1492, %v1361
      %1578 = vst.msk [vmem:[%s262 + $0x2a8] sm:$0xff] %vm1492, %v1364
      %1579 = vst.msk [vmem:[%s262 + $0x2b0] sm:$0xff] %vm1492, %v1367
      %1580 = vst.msk [vmem:[%s262 + $0x2b8] sm:$0xff] %vm1492, %v1370
      %1581 = vst.msk [vmem:[%s262 + $0x2c0] sm:$0xff] %vm1492, %v1373
      %1582 = vst.msk [vmem:[%s262 + $0x2c8] sm:$0xff] %vm1492, %v1376
      %1583 = vst.msk [vmem:[%s262 + $0x2d0] sm:$0xff] %vm1492, %v1379
      %1584 = vst.msk [vmem:[%s262 + $0x2d8] sm:$0xff] %vm1492, %v1382
      %1585 = vst.msk [vmem:[%s262 + $0x2e0] sm:$0xff] %vm1492, %v1385
      %1586 = vst.msk [vmem:[%s262 + $0x2e8] sm:$0xff] %vm1492, %v1388
      %1587 = vst.msk [vmem:[%s262 + $0x2f0] sm:$0xff] %vm1492, %v1391
      %1588 = vst.msk [vmem:[%s262 + $0x2f8] sm:$0xff] %vm1492, %v1394
      %1589 = vst.msk [vmem:[%s262 + $0x300] sm:$0xff] %vm1492, %v1397
      %1590 = vst.msk [vmem:[%s262 + $0x308] sm:$0xff] %vm1492, %v1400
      %1591 = vst.msk [vmem:[%s262 + $0x310] sm:$0xff] %vm1492, %v1403
      %1592 = vst.msk [vmem:[%s262 + $0x318] sm:$0xff] %vm1492, %v1406
      %1593 = vst.msk [vmem:[%s262 + $0x320] sm:$0xff] %vm1492, %v1409
      %1594 = vst.msk [vmem:[%s262 + $0x328] sm:$0xff] %vm1492, %v1412
      %1595 = vst.msk [vmem:[%s262 + $0x330] sm:$0xff] %vm1492, %v1415
      %1596 = vst.msk [vmem:[%s262 + $0x338] sm:$0xff] %vm1492, %v1418
      %1597 = vst.msk [vmem:[%s262 + $0x340] sm:$0xff] %vm1492, %v1421
      %1598 = vst.msk [vmem:[%s262 + $0x348] sm:$0xff] %vm1492, %v1424
      %1599 = vst.msk [vmem:[%s262 + $0x350] sm:$0xff] %vm1492, %v1427
      %1600 = vst.msk [vmem:[%s262 + $0x358] sm:$0xff] %vm1492, %v1430
      %1601 = vst.msk [vmem:[%s262 + $0x360] sm:$0xff] %vm1492, %v1433
      %1602 = vst.msk [vmem:[%s262 + $0x368] sm:$0xff] %vm1492, %v1436
      %1603 = vst.msk [vmem:[%s262 + $0x370] sm:$0xff] %vm1492, %v1439
      %1604 = vst.msk [vmem:[%s262 + $0x378] sm:$0xff] %vm1492, %v1442
      %1605 = vst.msk [vmem:[%s262 + $0x380] sm:$0xff] %vm1492, %v1445
      %1606 = vst.msk [vmem:[%s262 + $0x388] sm:$0xff] %vm1492, %v1448
      %1607 = vst.msk [vmem:[%s262 + $0x390] sm:$0xff] %vm1492, %v1451
      %1608 = vst.msk [vmem:[%s262 + $0x398] sm:$0xff] %vm1492, %v1454
      %1609 = vst.msk [vmem:[%s262 + $0x3a0] sm:$0xff] %vm1492, %v1457
      %1610 = vst.msk [vmem:[%s262 + $0x3a8] sm:$0xff] %vm1492, %v1460
      %1611 = vst.msk [vmem:[%s262 + $0x3b0] sm:$0xff] %vm1492, %v1463
      %1612 = vst.msk [vmem:[%s262 + $0x3b8] sm:$0xff] %vm1492, %v1466
      %1613 = vst.msk [vmem:[%s262 + $0x3c0] sm:$0xff] %vm1492, %v1469
      %1614 = vst.msk [vmem:[%s262 + $0x3c8] sm:$0xff] %vm1492, %v1472
      %1615 = vst.msk [vmem:[%s262 + $0x3d0] sm:$0xff] %vm1492, %v1475
      %1616 = vst.msk [vmem:[%s262 + $0x3d8] sm:$0xff] %vm1492, %v1478
      %1617 = vst.msk [vmem:[%s262 + $0x3e0] sm:$0xff] %vm1492, %v1481
      %1618 = vst.msk [vmem:[%s262 + $0x3e8] sm:$0xff] %vm1492, %v1484
      %1619 = vst.msk [vmem:[%s262 + $0x3f0] sm:$0xff] %vm1492, %v1487
      %1620 = vst.msk [vmem:[%s262 + $0x3f8] sm:$0xff] %vm1492, %v1490
      %s1621 = smul.u32 128, %s21
      %p1622 = scmp.lt.s32.totalorder %s20, 1
      %s1623 = scalar_select %p1622, %s20, 1
      %p1624 = scmp.lt.s32.totalorder %s1621, 127
      %s1625 = scalar_select %p1624, %s1621, 127
      %s1626 = smul.addr %s1623, 128
      %s1627 = sadd.s32 %s1625, %s1626
      %s1628 = smul.addr %s1627, 8
      %s1629 = scalar_lea.vmem %s5, %s1628
      // Predicated region
      $region41: #{deepset_encoder_forward.1} parent=39 // pred_check
        %p1630 = pneg %p160
      $region42: #{deepset_encoder_forward.1} parent=39 // pred_check_branch
        %1632 = sbr.rel (%p1630) target = $region44
      $region43: #{deepset_encoder_forward.1} parent=39 // pred_region
        %s1633 = smul.u32 128, %s21
      $region44: #{deepset_encoder_forward.1} parent=39 // pred_fallthru
        _
    $region40: #{deepset_encoder_forward.1} parent=5 // pred_fallthru
      _
    %p1634 = scmp.le.s32.totalorder 2, %s11
    // Predicated region
    $region45: #{deepset_encoder_forward.1} parent=5 // pred_check
      %p1635 = pneg %p1634
    $region46: #{deepset_encoder_forward.1} parent=5 // pred_check_branch
      %1637 = sbr.rel (%p1635) target = $region48
    $region47: #{deepset_encoder_forward.1} parent=5 // pred_region
      %s1638 = ssub.s32 %s11, 2
      // Predicated region
      $region49: #{deepset_encoder_forward.1} parent=47 // pred_check
        %p1639 = pneg %p166
      $region50: #{deepset_encoder_forward.1} parent=47 // pred_check_branch
        %1641 = sbr.rel (%p1639) target = $region52
      $region51: #{deepset_encoder_forward.1} parent=47 // pred_region
        %s1642 = smul.u32 128, %s23
        %p1643 = scmp.lt.s32.totalorder %s22, 1
        %s1644 = scalar_select %p1643, %s22, 1
        %p1645 = scmp.lt.s32.totalorder %s1642, 127
        %s1646 = scalar_select %p1645, %s1642, 127
        %s1647 = smul.addr %s1644, 128
        %s1648 = sadd.s32 %s1646, %s1647
        %s1649 = smul.addr %s1648, 8
        %s1650 = scalar_lea.vmem %s5, %s1649
      $region52: #{deepset_encoder_forward.1} parent=47 // pred_fallthru
        _
    $region48: #{deepset_encoder_forward.1} parent=5 // pred_fallthru
      _
  $region6: #{deepset_encoder_forward.1} parent=0 // loop_footer
    %s15 = sadd.s32 1, %s11
  $region7: #{deepset_encoder_forward.1} parent=0 // loop_footer_branch
    %10 = sbr.rel target = $region3
  $region8: #{deepset_encoder_forward.1} parent=0 // loop_exit
    _

</llo_original>
